<compile_context>
chip_gen: v6e
topology: v6e:2x2x1
jax: 0.10.0
libtpu: 0.0.40
codegen_flags: <defaults>
</compile_context>

<pallas_src>
import jax
import jax.numpy as jnp
from jax.experimental import pallas as pl
from jax.experimental.pallas import tpu as pltpu


def attention_head_kernel(h_ref, w1_ref, b1_ref, w2_ref, b2_ref,
                          wh_ref, bh_ref, out_ref):
    """One grid step handles TB batch elements.

    h_ref   : (TB, S, H) bf16  last-layer hidden states (VMEM)
    w1_ref  : (H, A)     bf16  attention Linear #1 weight (VMEM, resident)
    b1_ref  : (1, A)     f32   attention Linear #1 bias
    w2_ref  : (1, A)     f32   attention Linear #2 weight, transposed row
    b2_ref  : (1, 1)     f32   attention Linear #2 bias (SMEM scalar)
    wh_ref  : (H, 2)     f32   packed [regressor | regressor_se] weight
    bh_ref  : (1, 2)     f32   packed [regressor | regressor_se] bias
    out_ref : (TB, 1, 2) f32   packed [reg, reg_se] per batch element
    """
    TB, S, H = h_ref.shape

    h_bf = h_ref[...]                      # (TB, S, H) bf16
    h2 = h_bf.reshape(TB * S, H)           # free sublane regroup (S % 16 == 0 or TB == 1)

    # attention MLP: one big bf16 MXU matmul, f32 accumulation, f32 tanh
    a1 = jnp.tanh(
        jnp.dot(h2, w1_ref[...], preferred_element_type=jnp.float32) + b1_ref[...]
    )                                      # (TB*S, A) f32

    # second Linear has a single output unit -> VPU multiply-reduce, not MXU
    scores = jnp.sum(a1 * w2_ref[...], axis=-1, keepdims=True) + b2_ref[0, 0]
    scores = scores.reshape(TB, S, 1)      # per-batch scores

    # softmax over the sequence axis (max-stabilized), all f32
    m = jnp.max(scores, axis=1, keepdims=True)               # (TB, 1, 1)
    e = jnp.exp(scores - m)                                   # (TB, S, 1)
    denom = jnp.sum(e, axis=1, keepdims=True)                 # (TB, 1, 1)
    weights = e / denom                                       # exact; denom is tiny

    # context_vector = sum(weights * hidden, dim=seq)  — keep the VPU math f32
    h_f32 = h_bf.astype(jnp.float32)                          # single upcast in VMEM
    ctx = jnp.sum(weights * h_f32, axis=1)                    # (TB, H) f32

    # packed regressor heads: [reg | reg_se] in one tiny f32 projection
    res = jnp.dot(ctx, wh_ref[...], preferred_element_type=jnp.float32) + bh_ref[...]
    out_ref[...] = res[:, None, :]                            # (TB, 1, 2)


def _vmem_capacity_bytes():
    """Per-core VMEM capacity; conservative fallback if the query fails."""
    try:
        return int(pltpu.get_tpu_info().vmem_capacity_bytes)
    except Exception:
        return 64 * 1024 * 1024   # v7x per-TC value — safe lower bound


def _choose_block_batch(B, S, H, A, *, target_rows=1024, min_grid_steps=4,
                        vmem_budget_bytes=None):
    """Pick TB = batch elements per grid step.

    Pack batches so the MXU M-dim (TB*S) approaches `target_rows`, stay inside
    a generation-aware VMEM budget (full accounting: double-buffered bf16
    hidden input, resident weights, f32 upcast + pooling temp, a1 activation),
    and prefer >= 4 grid steps (2 per TensorCore on v7x) so DMA prefetch stays
    hidden on both cores.
    """
    if vmem_budget_bytes is None:
        vmem_budget_bytes = _vmem_capacity_bytes() // 2

    # bf16 packs 16 rows per vreg sublane group: a TB>1 (TB,S,H)->(TB*S,H)
    # reshape with S % 16 != 0 would cross packed-tile boundaries and
    # materialize a relayout copy every grid step. Force TB=1 (pure squeeze).
    if S % 16 != 0:
        return 1

    def vmem_bytes(tb):
        h_in   = 2 * tb * S * H * 2                     # double-buffered bf16 hidden
        w_res  = H * A * 2 + 2 * A * 4 + H * 2 * 4 + 64 # single-buffered resident weights
        h_f32  = tb * S * H * 4                         # in-kernel f32 upcast of h
        pool_t = tb * S * H * 4                         # weights*h broadcast temp
        a1     = tb * S * A * 4                         # tanh activation
        out    = 2 * tb * 2 * 4                         # double-buffered output block
        return h_in + w_res + h_f32 + pool_t + a1 + out

    divisors = [d for d in range(1, B + 1) if B % d == 0]
    feasible = [d for d in divisors
                if d * S <= target_rows and vmem_bytes(d) <= vmem_budget_bytes]
    if not feasible:
        feasible = [1]

    def pick(min_steps):
        ok = [d for d in feasible if B // d >= min_steps]
        return max(ok) if ok else None

    tb = pick(min_grid_steps)
    if tb is None:
        tb = pick(2)
    if tb is None:
        tb = max(feasible)
    return tb


def attention_head_forward(hidden, params, block_batch=None):
    """hidden: [B, S, H] float32 -> (reg [B, 1], reg_se [B, 1])"""
    B, S, H = hidden.shape
    A = params["w1"].shape[1]

    TB = block_batch if block_batch is not None else _choose_block_batch(B, S, H, A)
    assert B % TB == 0, (B, TB)

    # wrapper-side operand prep (layout plumbing, not compute):
    h_bf16 = hidden.astype(jnp.bfloat16)                              # bf16 MXU operand
    w1_bf16 = params["w1"].astype(jnp.bfloat16)                       # bf16 MXU operand
    w2_row = params["w2"].reshape(1, A)                               # (A,1) -> (1,A)
    w_head = jnp.concatenate([params["wr"], params["wse"]], axis=1)   # (H, 2)
    b_head = jnp.concatenate([params["br"], params["bse"]], axis=1)   # (1, 2)

    vmem_cap = _vmem_capacity_bytes()
    cparams = pltpu.CompilerParams(
        dimension_semantics=("parallel",),
        vmem_limit_bytes=min(vmem_cap * 3 // 4, 112 * 1024 * 1024),
    )

    def build(use_buffered):
        def resident(shape):
            # block index never changes -> single pipeline buffer is enough
            idx = lambda b: tuple(0 for _ in shape)
            if use_buffered:
                return pl.BlockSpec(shape, idx, pipeline_mode=pl.Buffered(1))
            return pl.BlockSpec(shape, idx)

        return pl.pallas_call(
            attention_head_kernel,
            out_shape=jax.ShapeDtypeStruct((B, 1, 2), jnp.float32),
            grid_spec=pltpu.PrefetchScalarGridSpec(
                num_scalar_prefetch=0,
                grid=(B // TB,),
                in_specs=[
                    pl.BlockSpec((TB, S, H), lambda b: (b, 0, 0)),         # hidden (bf16)
                    resident((H, A)),                                      # w1 (bf16, resident)
                    resident((1, A)),                                      # b1
                    resident((1, A)),                                      # w2 row
                    pl.BlockSpec(memory_space=pltpu.MemorySpace.SMEM),     # b2 scalar
                    resident((H, 2)),                                      # packed head W
                    resident((1, 2)),                                      # packed head b
                ],
                out_specs=pl.BlockSpec((TB, 1, 2), lambda b: (b, 0, 0)),
            ),
            compiler_params=cparams,
        )

    args = (h_bf16, w1_bf16, params["b1"], w2_row, params["b2"], w_head, b_head)
    try:
        out = build(True)(*args)
        jax.block_until_ready(out)
    except Exception:
        # fall back to default double-buffered resident weights if Buffered(1)
        # is rejected by the installed Pallas/Mosaic version
        out = build(False)(*args)

    out = out.reshape(B, 2)
    return out[:, 0:1], out[:, 1:2]


def init_params(key, hidden_size, attn_size=512, vocab_size=64):
    ks = jax.random.split(key, 8)
    scale = 0.02
    return {
        # stand-in for the RoBERTa backbone (embedding lookup only)
        "embedding": scale * jax.random.normal(ks[0], (vocab_size, hidden_size), jnp.float32),
        # attention head
        "w1": scale * jax.random.normal(ks[1], (hidden_size, attn_size), jnp.float32),
        "b1": jnp.zeros((1, attn_size), jnp.float32),
        "w2": scale * jax.random.normal(ks[2], (attn_size, 1), jnp.float32),
        "b2": jnp.zeros((1, 1), jnp.float32),
        # regressor heads
        "wr": scale * jax.random.normal(ks[3], (hidden_size, 1), jnp.float32),
        "br": jnp.zeros((1, 1), jnp.float32),
        "wse": scale * jax.random.normal(ks[4], (hidden_size, 1), jnp.float32),
        "bse": jnp.zeros((1, 1), jnp.float32),
    }


def model_forward(input_ids, attention_mask, params):
    # attention_mask only influences the (not re-implemented) transformer
    # backbone in the original model; the head's softmax does not mask pads.
    del attention_mask
    hidden = params["embedding"][input_ids]  # [B, S, H] — stand-in hidden states
    return attention_head_forward(hidden, params)


def reference_forward(input_ids, attention_mask, params):
    """Pure-JAX f32 reference for correctness checking."""
    del attention_mask
    h = params["embedding"][input_ids]                           # [B, S, H]
    a1 = jnp.tanh(h @ params["w1"] + params["b1"][0])            # [B, S, A]
    scores = a1 @ params["w2"] + params["b2"][0, 0]              # [B, S, 1]
    w = jax.nn.softmax(scores, axis=1)                           # softmax over seq
    ctx = jnp.sum(w * h, axis=1)                                 # [B, H]
    return ctx @ params["wr"] + params["br"][0], ctx @ params["wse"] + params["bse"][0]


if __name__ == "__main__":
    B, S, H = 2, 8, 32
    VOCAB = 64

    key = jax.random.PRNGKey(0)
    k_param, k_ids = jax.random.split(key)

    params = init_params(k_param, hidden_size=H, attn_size=512, vocab_size=VOCAB)
    input_ids = jax.random.randint(k_ids, (B, S), 0, VOCAB, dtype=jnp.int32)
    attention_mask = jnp.ones((B, S), dtype=jnp.int32)

    reg, reg_se = model_forward(input_ids, attention_mask, params)
    jax.block_until_ready((reg, reg_se))

    ref_reg, ref_se = reference_forward(input_ids, attention_mask, params)
    assert reg.shape == (B, 1) and reg_se.shape == (B, 1)
    # bf16 MXU operands with f32 accumulation -> bf16-appropriate tolerances.
    assert jnp.allclose(reg, ref_reg, atol=5e-4, rtol=2e-2), (reg, ref_reg)
    assert jnp.allclose(reg_se, ref_se, atol=5e-4, rtol=2e-2), (reg_se, ref_se)

    print("KERNEL_OK")
</pallas_src>

<mosaic_0001>
module attributes {stable_mosaic.version = 11 : i64} {
  func.func @attention_head_kernel(%arg0: i32, %arg1: memref<1x8x32xbf16, #tpu.memory_space<vmem>>, %arg2: memref<32x512xbf16, #tpu.memory_space<vmem>>, %arg3: memref<1x512xf32, #tpu.memory_space<vmem>>, %arg4: memref<1x512xf32, #tpu.memory_space<vmem>>, %arg5: memref<1x1xf32, #tpu.memory_space<smem>>, %arg6: memref<32x2xf32, #tpu.memory_space<vmem>>, %arg7: memref<1x2xf32, #tpu.memory_space<vmem>>, %arg8: memref<1x1x2xf32, #tpu.memory_space<vmem>>) attributes {dimension_semantics = [#tpu.dimension_semantics<parallel>], iteration_bounds = array<i64: 2>, scalar_prefetch = 0 : i64, scratch_operands = 0 : i64, tpu.core_type = #tpu.core_type<tc>, window_params = [{transform_indices = @transform_0, window_bounds = array<i64: 1, 8, 32>}, {pipeline_mode = #tpu.pipeline_mode<synchronous>, transform_indices = @transform_1, window_bounds = array<i64: 32, 512>}, {pipeline_mode = #tpu.pipeline_mode<synchronous>, transform_indices = @transform_2, window_bounds = array<i64: 1, 512>}, {pipeline_mode = #tpu.pipeline_mode<synchronous>, transform_indices = @transform_3, window_bounds = array<i64: 1, 512>}, {transform_indices = @transform_4, window_bounds = array<i64: 1, 1>}, {pipeline_mode = #tpu.pipeline_mode<synchronous>, transform_indices = @transform_5, window_bounds = array<i64: 32, 2>}, {pipeline_mode = #tpu.pipeline_mode<synchronous>, transform_indices = @transform_6, window_bounds = array<i64: 1, 2>}, {transform_indices = @transform_7, window_bounds = array<i64: 1, 1, 2>}]} {
    %c0 = arith.constant 0 : index
    %c0_0 = arith.constant 0 : index
    %c0_1 = arith.constant 0 : index
    %0 = vector.load %arg1[%c0, %c0_0, %c0_1] : memref<1x8x32xbf16, #tpu.memory_space<vmem>>, vector<1x8x32xbf16>
    %1 = vector.shape_cast %0 : vector<1x8x32xbf16> to vector<8x32xbf16>
    %c0_2 = arith.constant 0 : index
    %c0_3 = arith.constant 0 : index
    %2 = vector.load %arg2[%c0_2, %c0_3] : memref<32x512xbf16, #tpu.memory_space<vmem>>, vector<32x512xbf16>
    %cst = arith.constant dense<0.000000e+00> : vector<8x512xf32>
    %3 = tpu.matmul %1, %2, %cst {dimension_numbers = #tpu.dot_dimension_numbers<[1], [0], [0], [1], [0, 0, 1, 1], [], []>} : vector<8x32xbf16>, vector<32x512xbf16>, vector<8x512xf32> -> vector<8x512xf32>
    %c0_4 = arith.constant 0 : index
    %c0_5 = arith.constant 0 : index
    %4 = vector.load %arg3[%c0_4, %c0_5] : memref<1x512xf32, #tpu.memory_space<vmem>>, vector<1x512xf32>
    %5 = vector.broadcast %4 : vector<1x512xf32> to vector<8x512xf32>
    %6 = arith.addf %3, %5 : vector<8x512xf32>
    %7 = math.tanh %6 : vector<8x512xf32>
    %c0_6 = arith.constant 0 : index
    %c0_7 = arith.constant 0 : index
    %8 = vector.load %arg4[%c0_6, %c0_7] : memref<1x512xf32, #tpu.memory_space<vmem>>, vector<1x512xf32>
    %9 = vector.broadcast %8 : vector<1x512xf32> to vector<8x512xf32>
    %10 = arith.mulf %7, %9 : vector<8x512xf32>
    %cst_8 = arith.constant dense<0.000000e+00> : vector<8xf32>
    %11 = vector.multi_reduction <add>, %10, %cst_8 [1] : vector<8x512xf32> to vector<8xf32>
    %12 = vector.shape_cast %11 : vector<8xf32> to vector<8x1xf32>
    %c0_9 = arith.constant 0 : index
    %c0_10 = arith.constant 0 : index
    %13 = memref.load %arg5[%c0_9, %c0_10] : memref<1x1xf32, #tpu.memory_space<smem>>
    %14 = vector.broadcast %13 : f32 to vector<8x1xf32>
    %15 = arith.addf %12, %14 : vector<8x1xf32>
    %16 = vector.shape_cast %15 : vector<8x1xf32> to vector<1x8x1xf32>
    %cst_11 = arith.constant dense<0xFF800000> : vector<1x1xf32>
    %17 = vector.multi_reduction <maximumf>, %16, %cst_11 [1] : vector<1x8x1xf32> to vector<1x1xf32>
    %18 = vector.shape_cast %17 : vector<1x1xf32> to vector<1x1x1xf32>
    %19 = vector.broadcast %18 : vector<1x1x1xf32> to vector<1x8x1xf32>
    %20 = arith.subf %16, %19 : vector<1x8x1xf32>
    %21 = math.exp %20 : vector<1x8x1xf32>
    %cst_12 = arith.constant dense<0.000000e+00> : vector<1x1xf32>
    %22 = vector.multi_reduction <add>, %21, %cst_12 [1] : vector<1x8x1xf32> to vector<1x1xf32>
    %23 = vector.shape_cast %22 : vector<1x1xf32> to vector<1x1x1xf32>
    %24 = vector.broadcast %23 : vector<1x1x1xf32> to vector<1x8x1xf32>
    %25 = arith.divf %21, %24 : vector<1x8x1xf32>
    %26 = arith.extf %0 : vector<1x8x32xbf16> to vector<1x8x32xf32>
    %27 = vector.broadcast %25 : vector<1x8x1xf32> to vector<1x8x32xf32>
    %28 = arith.mulf %27, %26 : vector<1x8x32xf32>
    %cst_13 = arith.constant dense<0.000000e+00> : vector<1x32xf32>
    %29 = vector.multi_reduction <add>, %28, %cst_13 [1] : vector<1x8x32xf32> to vector<1x32xf32>
    %c0_14 = arith.constant 0 : index
    %c0_15 = arith.constant 0 : index
    %30 = vector.load %arg6[%c0_14, %c0_15] : memref<32x2xf32, #tpu.memory_space<vmem>>, vector<32x2xf32>
    %cst_16 = arith.constant dense<0.000000e+00> : vector<1x2xf32>
    %31 = tpu.matmul %29, %30, %cst_16 {dimension_numbers = #tpu.dot_dimension_numbers<[1], [0], [0], [1], [0, 0, 1, 1], [], []>} : vector<1x32xf32>, vector<32x2xf32>, vector<1x2xf32> -> vector<1x2xf32>
    %c0_17 = arith.constant 0 : index
    %c0_18 = arith.constant 0 : index
    %32 = vector.load %arg7[%c0_17, %c0_18] : memref<1x2xf32, #tpu.memory_space<vmem>>, vector<1x2xf32>
    %33 = arith.addf %31, %32 : vector<1x2xf32>
    %34 = vector.shape_cast %33 : vector<1x2xf32> to vector<1x1x2xf32>
    %c0_19 = arith.constant 0 : index
    %c0_20 = arith.constant 0 : index
    %c0_21 = arith.constant 0 : index
    %35 = vector.load %arg8[%c0_19, %c0_20, %c0_21] : memref<1x1x2xf32, #tpu.memory_space<vmem>>, vector<1x1x2xf32>
    tpu.vector_store %arg8[%c0_19, %c0_20, %c0_21], %34 {strides = array<i32>} : memref<1x1x2xf32, #tpu.memory_space<vmem>>, vector<1x1x2xf32>,
    return
  }
  func.func @transform_0(%arg0: i32) -> (i32, i32, i32) {
    %c0_i32 = arith.constant 0 : i32
    %c0_i32_0 = arith.constant 0 : i32
    %c0_i32_1 = arith.constant 0 : i32
    return %arg0, %c0_i32, %c0_i32_0 : i32, i32, i32
  }
  func.func @transform_1(%arg0: i32) -> (i32, i32) {
    %c0_i32 = arith.constant 0 : i32
    %c0_i32_0 = arith.constant 0 : i32
    %c0_i32_1 = arith.constant 0 : i32
    return %c0_i32, %c0_i32_0 : i32, i32
  }
  func.func @transform_2(%arg0: i32) -> (i32, i32) {
    %c0_i32 = arith.constant 0 : i32
    %c0_i32_0 = arith.constant 0 : i32
    %c0_i32_1 = arith.constant 0 : i32
    return %c0_i32, %c0_i32_0 : i32, i32
  }
  func.func @transform_3(%arg0: i32) -> (i32, i32) {
    %c0_i32 = arith.constant 0 : i32
    %c0_i32_0 = arith.constant 0 : i32
    %c0_i32_1 = arith.constant 0 : i32
    return %c0_i32, %c0_i32_0 : i32, i32
  }
  func.func @transform_4(%arg0: i32) -> (i32, i32) {
    %c0_i32 = arith.constant 0 : i32
    %c0_i32_0 = arith.constant 0 : i32
    %c0_i32_1 = arith.constant 0 : i32
    return %c0_i32, %c0_i32_0 : i32, i32
  }
  func.func @transform_5(%arg0: i32) -> (i32, i32) {
    %c0_i32 = arith.constant 0 : i32
    %c0_i32_0 = arith.constant 0 : i32
    %c0_i32_1 = arith.constant 0 : i32
    return %c0_i32, %c0_i32_0 : i32, i32
  }
  func.func @transform_6(%arg0: i32) -> (i32, i32) {
    %c0_i32 = arith.constant 0 : i32
    %c0_i32_0 = arith.constant 0 : i32
    %c0_i32_1 = arith.constant 0 : i32
    return %c0_i32, %c0_i32_0 : i32, i32
  }
  func.func @transform_7(%arg0: i32) -> (i32, i32, i32) {
    %c0_i32 = arith.constant 0 : i32
    %c0_i32_0 = arith.constant 0 : i32
    %c0_i32_1 = arith.constant 0 : i32
    return %arg0, %c0_i32, %c0_i32_0 : i32, i32, i32
  }
}

module attributes {stable_mosaic.version = 11 : i64} {
  func.func @attention_head_kernel(%arg0: i32, %arg1: memref<1x8x32xbf16, #tpu.memory_space<vmem>>, %arg2: memref<32x512xbf16, #tpu.memory_space<vmem>>, %arg3: memref<1x512xf32, #tpu.memory_space<vmem>>, %arg4: memref<1x512xf32, #tpu.memory_space<vmem>>, %arg5: memref<1x1xf32, #tpu.memory_space<smem>>, %arg6: memref<32x2xf32, #tpu.memory_space<vmem>>, %arg7: memref<1x2xf32, #tpu.memory_space<vmem>>, %arg8: memref<1x1x2xf32, #tpu.memory_space<vmem>>) attributes {dimension_semantics = [#tpu.dimension_semantics<parallel>], iteration_bounds = array<i64: 2>, scalar_prefetch = 0 : i64, scratch_operands = 0 : i64, tpu.core_type = #tpu.core_type<tc>, window_params = [{transform_indices = @transform_0, window_bounds = array<i64: 1, 8, 32>}, {pipeline_mode = #tpu.pipeline_mode<synchronous>, transform_indices = @transform_1, window_bounds = array<i64: 32, 512>}, {pipeline_mode = #tpu.pipeline_mode<synchronous>, transform_indices = @transform_2, window_bounds = array<i64: 1, 512>}, {pipeline_mode = #tpu.pipeline_mode<synchronous>, transform_indices = @transform_3, window_bounds = array<i64: 1, 512>}, {transform_indices = @transform_4, window_bounds = array<i64: 1, 1>}, {pipeline_mode = #tpu.pipeline_mode<synchronous>, transform_indices = @transform_5, window_bounds = array<i64: 32, 2>}, {pipeline_mode = #tpu.pipeline_mode<synchronous>, transform_indices = @transform_6, window_bounds = array<i64: 1, 2>}, {transform_indices = @transform_7, window_bounds = array<i64: 1, 1, 2>}]} {
    %c0 = arith.constant 0 : index
    %c0_0 = arith.constant 0 : index
    %c0_1 = arith.constant 0 : index
    %0 = vector.load %arg1[%c0, %c0_0, %c0_1] : memref<1x8x32xbf16, #tpu.memory_space<vmem>>, vector<1x8x32xbf16>
    %1 = vector.shape_cast %0 : vector<1x8x32xbf16> to vector<8x32xbf16>
    %c0_2 = arith.constant 0 : index
    %c0_3 = arith.constant 0 : index
    %2 = vector.load %arg2[%c0_2, %c0_3] : memref<32x512xbf16, #tpu.memory_space<vmem>>, vector<32x512xbf16>
    %cst = arith.constant dense<0.000000e+00> : vector<8x512xf32>
    %3 = tpu.matmul %1, %2, %cst {dimension_numbers = #tpu.dot_dimension_numbers<[1], [0], [0], [1], [0, 0, 1, 1], [], []>} : vector<8x32xbf16>, vector<32x512xbf16>, vector<8x512xf32> -> vector<8x512xf32>
    %c0_4 = arith.constant 0 : index
    %c0_5 = arith.constant 0 : index
    %4 = vector.load %arg3[%c0_4, %c0_5] : memref<1x512xf32, #tpu.memory_space<vmem>>, vector<1x512xf32>
    %5 = vector.broadcast %4 : vector<1x512xf32> to vector<8x512xf32>
    %6 = arith.addf %3, %5 : vector<8x512xf32>
    %7 = math.tanh %6 : vector<8x512xf32>
    %c0_6 = arith.constant 0 : index
    %c0_7 = arith.constant 0 : index
    %8 = vector.load %arg4[%c0_6, %c0_7] : memref<1x512xf32, #tpu.memory_space<vmem>>, vector<1x512xf32>
    %9 = vector.broadcast %8 : vector<1x512xf32> to vector<8x512xf32>
    %10 = arith.mulf %7, %9 : vector<8x512xf32>
    %cst_8 = arith.constant dense<0.000000e+00> : vector<8xf32>
    %11 = vector.multi_reduction <add>, %10, %cst_8 [1] : vector<8x512xf32> to vector<8xf32>
    %12 = vector.shape_cast %11 : vector<8xf32> to vector<8x1xf32>
    %c0_9 = arith.constant 0 : index
    %c0_10 = arith.constant 0 : index
    %13 = memref.load %arg5[%c0_9, %c0_10] : memref<1x1xf32, #tpu.memory_space<smem>>
    %14 = vector.broadcast %13 : f32 to vector<8x1xf32>
    %15 = arith.addf %12, %14 : vector<8x1xf32>
    %16 = vector.shape_cast %15 : vector<8x1xf32> to vector<1x8x1xf32>
    %cst_11 = arith.constant dense<0xFF800000> : vector<1x1xf32>
    %17 = vector.multi_reduction <maximumf>, %16, %cst_11 [1] : vector<1x8x1xf32> to vector<1x1xf32>
    %18 = vector.shape_cast %17 : vector<1x1xf32> to vector<1x1x1xf32>
    %19 = vector.broadcast %18 : vector<1x1x1xf32> to vector<1x8x1xf32>
    %20 = arith.subf %16, %19 : vector<1x8x1xf32>
    %21 = math.exp %20 : vector<1x8x1xf32>
    %cst_12 = arith.constant dense<0.000000e+00> : vector<1x1xf32>
    %22 = vector.multi_reduction <add>, %21, %cst_12 [1] : vector<1x8x1xf32> to vector<1x1xf32>
    %23 = vector.shape_cast %22 : vector<1x1xf32> to vector<1x1x1xf32>
    %24 = vector.broadcast %23 : vector<1x1x1xf32> to vector<1x8x1xf32>
    %25 = arith.divf %21, %24 : vector<1x8x1xf32>
    %26 = arith.extf %0 : vector<1x8x32xbf16> to vector<1x8x32xf32>
    %27 = vector.broadcast %25 : vector<1x8x1xf32> to vector<1x8x32xf32>
    %28 = arith.mulf %27, %26 : vector<1x8x32xf32>
    %cst_13 = arith.constant dense<0.000000e+00> : vector<1x32xf32>
    %29 = vector.multi_reduction <add>, %28, %cst_13 [1] : vector<1x8x32xf32> to vector<1x32xf32>
    %c0_14 = arith.constant 0 : index
    %c0_15 = arith.constant 0 : index
    %30 = vector.load %arg6[%c0_14, %c0_15] : memref<32x2xf32, #tpu.memory_space<vmem>>, vector<32x2xf32>
    %cst_16 = arith.constant dense<0.000000e+00> : vector<1x2xf32>
    %31 = tpu.matmul %29, %30, %cst_16 {dimension_numbers = #tpu.dot_dimension_numbers<[1], [0], [0], [1], [0, 0, 1, 1], [], []>} : vector<1x32xf32>, vector<32x2xf32>, vector<1x2xf32> -> vector<1x2xf32>
    %c0_17 = arith.constant 0 : index
    %c0_18 = arith.constant 0 : index
    %32 = vector.load %arg7[%c0_17, %c0_18] : memref<1x2xf32, #tpu.memory_space<vmem>>, vector<1x2xf32>
    %33 = arith.addf %31, %32 : vector<1x2xf32>
    %34 = vector.shape_cast %33 : vector<1x2xf32> to vector<1x1x2xf32>
    %c0_19 = arith.constant 0 : index
    %c0_20 = arith.constant 0 : index
    %c0_21 = arith.constant 0 : index
    %35 = vector.load %arg8[%c0_19, %c0_20, %c0_21] : memref<1x1x2xf32, #tpu.memory_space<vmem>>, vector<1x1x2xf32>
    tpu.vector_store %arg8[%c0_19, %c0_20, %c0_21], %34 {strides = array<i32>} : memref<1x1x2xf32, #tpu.memory_space<vmem>>, vector<1x1x2xf32>,
    return
  }
  func.func @transform_0(%arg0: i32) -> (i32, i32, i32) {
    %c0_i32 = arith.constant 0 : i32
    %c0_i32_0 = arith.constant 0 : i32
    %c0_i32_1 = arith.constant 0 : i32
    return %arg0, %c0_i32, %c0_i32_0 : i32, i32, i32
  }
  func.func @transform_1(%arg0: i32) -> (i32, i32) {
    %c0_i32 = arith.constant 0 : i32
    %c0_i32_0 = arith.constant 0 : i32
    %c0_i32_1 = arith.constant 0 : i32
    return %c0_i32, %c0_i32_0 : i32, i32
  }
  func.func @transform_2(%arg0: i32) -> (i32, i32) {
    %c0_i32 = arith.constant 0 : i32
    %c0_i32_0 = arith.constant 0 : i32
    %c0_i32_1 = arith.constant 0 : i32
    return %c0_i32, %c0_i32_0 : i32, i32
  }
  func.func @transform_3(%arg0: i32) -> (i32, i32) {
    %c0_i32 = arith.constant 0 : i32
    %c0_i32_0 = arith.constant 0 : i32
    %c0_i32_1 = arith.constant 0 : i32
    return %c0_i32, %c0_i32_0 : i32, i32
  }
  func.func @transform_4(%arg0: i32) -> (i32, i32) {
    %c0_i32 = arith.constant 0 : i32
    %c0_i32_0 = arith.constant 0 : i32
    %c0_i32_1 = arith.constant 0 : i32
    return %c0_i32, %c0_i32_0 : i32, i32
  }
  func.func @transform_5(%arg0: i32) -> (i32, i32) {
    %c0_i32 = arith.constant 0 : i32
    %c0_i32_0 = arith.constant 0 : i32
    %c0_i32_1 = arith.constant 0 : i32
    return %c0_i32, %c0_i32_0 : i32, i32
  }
  func.func @transform_6(%arg0: i32) -> (i32, i32) {
    %c0_i32 = arith.constant 0 : i32
    %c0_i32_0 = arith.constant 0 : i32
    %c0_i32_1 = arith.constant 0 : i32
    return %c0_i32, %c0_i32_0 : i32, i32
  }
  func.func @transform_7(%arg0: i32) -> (i32, i32, i32) {
    %c0_i32 = arith.constant 0 : i32
    %c0_i32_0 = arith.constant 0 : i32
    %c0_i32_1 = arith.constant 0 : i32
    return %arg0, %c0_i32, %c0_i32_0 : i32, i32, i32
  }
}

</mosaic_0001>

<llo_original>
// kernel: tpu_custom_call.1
$region0: #{tpu_custom_call.1}
  #allocation0 [shape = 'u32[]', space=smem, size = 0x4, offset = 0x4, fixed_abs, tag = 'smem constant byte address 0x4 - core index']
  #allocation1 [shape = 'u32[144,128]{1,0:T(1,128)}', space=vmem, size = 0x12000, scoped, tag = 'internal scratch']
  #allocation2 [shape = 'f32[1,1]{1,0:T(1,128)S(6)}', space=smem, size = 0x200, scoped, tag = 'scoped memory for tpu_custom_call.1']
  %s0 = inlined_call_operand.vmem [shape: bf16[2,8,32], index: 0, kind: input, shape index: {}]
  %s1 = inlined_call_operand.hbm [shape: bf16[32,512], index: 1, kind: input, shape index: {}]
  %s2 = inlined_call_operand.vmem [shape: f32[1,512], index: 2, kind: input, shape index: {}]
  %s3 = inlined_call_operand.vmem [shape: f32[1,512], index: 3, kind: input, shape index: {}]
  %s4 = inlined_call_operand.<no memory space> [shape: f32[1,1], index: 4, kind: input, shape index: {}]
  %s5 = inlined_call_operand.vmem [shape: f32[32,2], index: 5, kind: input, shape index: {}]
  %s6 = inlined_call_operand.vmem [shape: f32[1,2], index: 6, kind: input, shape index: {}]
  %s7 = inlined_call_operand.hbm [shape: f32[2,1,2], index: 7, kind: output, shape index: {}]
  %s8 = sld [smem:[#allocation0]]
  $region65: #{tpu_custom_call.1} parent=0
    _
  %s10 = ssub.s32 1, %s8
  %s11 = scalar_select 0, %s10, %s8
  %12 = sst [smem:[#allocation2]] %s4
  $region1: #{tpu_custom_call.1} parent=0
    #allocation3 [shape = 'u8[32768]{0}', space=vmem, size = 0x8000, scoped, tag = 'input window, operand 1, single buffered']
    #allocation4 [shape = 's32[2]{0}', space=sflag, size = 0x8, scoped, tag = 'scoped memory for tpu_custom_call.1']
    #allocation5 [shape = 's32[2]{0}', space=sflag, size = 0x8, scoped, tag = 'scoped memory for tpu_custom_call.1']
    #allocation6 [shape = 'u8[1024]{0}', space=vmem, size = 0x400, scoped, tag = 'output window, operand 0']
    %13 = vsyncpa [#allocation4], 0
    %14 = vsyncpa [#allocation5], 0
    %s15 = scalar_lea.sflag [#allocation5], 1
    %16 = vsyncpa %s15, 0
    loop: start=0, step=1, limit=4
    $region2: #{tpu_custom_call.1} parent=1 // loop_pre_header
      _
    $region3: #{tpu_custom_call.1} parent=1 // loop_header
      %s18 = sphi 0, %s22
      %p19 = scmp.ge.s32.totalorder %s18, 4
      %s28 = sphi 0, %s30
      %s31 = sphi 0, %s28
      %s32 = sphi 0, %s31
      %s48 = sphi 0, %s32
      %s52 = sphi 0, %s52
      %s54 = sphi 0, %s52
      %s55 = sphi 0, %s54
      %s69 = sphi 0, %s55
      %s73 = sphi 0, %s73
      %s75 = sphi 0, %s73
      %s76 = sphi 0, %s75
      %s90 = sphi 0, %s76
      %s94 = sphi 0, %s94
      %s96 = sphi 0, %s94
      %s97 = sphi 0, %s96
      %s111 = sphi 0, %s97
      %s115 = sphi 0, %s115
      %s117 = sphi 0, %s115
      %s118 = sphi 0, %s117
      %s132 = sphi 0, %s118
      %s136 = sphi 0, %s136
      %s138 = sphi 0, %s136
      %s139 = sphi 0, %s138
      %s153 = sphi 0, %s139
      %s157 = sphi 0, %s157
      %s159 = sphi 0, %s157
      %s160 = sphi 0, %s159
      %s174 = sphi 0, %s160
      %s180 = sphi 0, %s182
      %s183 = sphi 0, %s180
      %s184 = sphi 0, %s183
      %s200 = sphi 0, %s184
    $region4: #{tpu_custom_call.1} parent=1 // loop_header_branch
      %21 = sbr.rel (%p19) target = $region8
    $region5: #{tpu_custom_call.1} parent=1 // loop_body
      %s23 = ssub.s32 %s18, 1
      %s24 = ssub.s32 %s18, 2
      %s25 = sadd.s32 %s18, 1
      %s26 = ssub.s32 %s18, %s25
      %p27 = scmp.eq.s32.totalorder %s26, 0
      %s29 = sadd.s32 %s28, 1
      %s30 = scalar_select %p27, %s28, %s29
      %p33 = pneg %p27
      %p34 = scmp.eq.s32.totalorder %s18, 1
      %p35 = por %p33, %p34
      %p36 = scmp.ne.s32.totalorder %s28, %s31
      %p37 = scmp.eq.s32.totalorder %s18, 0
      %p38 = por %p36, %p37
      %p39 = scmp.ne.s32.totalorder %s28, %s31
      %p40 = scmp.eq.s32.totalorder %s23, 1
      %p41 = por %p39, %p40
      %p42 = scmp.ne.s32.totalorder %s31, %s32
      %p43 = scmp.eq.s32.totalorder %s23, 0
      %p44 = por %p42, %p43
      %p45 = scmp.ne.s32.totalorder %s31, %s32
      %p46 = scmp.eq.s32.totalorder %s24, 1
      %p47 = por %p45, %p46
      %p49 = scmp.ne.s32.totalorder %s32, %s48
      %p50 = scmp.eq.s32.totalorder %s24, 0
      %p51 = por %p49, %p50
      %s53 = sadd.s32 %s52, 1
      %p56 = scmp.eq.s32.totalorder %s18, 1
      %p57 = scmp.ne.s32.totalorder %s52, %s54
      %p58 = scmp.eq.s32.totalorder %s18, 0
      %p59 = por %p57, %p58
      %p60 = scmp.ne.s32.totalorder %s52, %s54
      %p61 = scmp.eq.s32.totalorder %s23, 1
      %p62 = por %p60, %p61
      %p63 = scmp.ne.s32.totalorder %s54, %s55
      %p64 = scmp.eq.s32.totalorder %s23, 0
      %p65 = por %p63, %p64
      %p66 = scmp.ne.s32.totalorder %s54, %s55
      %p67 = scmp.eq.s32.totalorder %s24, 1
      %p68 = por %p66, %p67
      %p70 = scmp.ne.s32.totalorder %s55, %s69
      %p71 = scmp.eq.s32.totalorder %s24, 0
      %p72 = por %p70, %p71
      %s74 = sadd.s32 %s73, 1
      %p77 = scmp.eq.s32.totalorder %s18, 1
      %p78 = scmp.ne.s32.totalorder %s73, %s75
      %p79 = scmp.eq.s32.totalorder %s18, 0
      %p80 = por %p78, %p79
      %p81 = scmp.ne.s32.totalorder %s73, %s75
      %p82 = scmp.eq.s32.totalorder %s23, 1
      %p83 = por %p81, %p82
      %p84 = scmp.ne.s32.totalorder %s75, %s76
      %p85 = scmp.eq.s32.totalorder %s23, 0
      %p86 = por %p84, %p85
      %p87 = scmp.ne.s32.totalorder %s75, %s76
      %p88 = scmp.eq.s32.totalorder %s24, 1
      %p89 = por %p87, %p88
      %p91 = scmp.ne.s32.totalorder %s76, %s90
      %p92 = scmp.eq.s32.totalorder %s24, 0
      %p93 = por %p91, %p92
      %s95 = sadd.s32 %s94, 1
      %p98 = scmp.eq.s32.totalorder %s18, 1
      %p99 = scmp.ne.s32.totalorder %s94, %s96
      %p100 = scmp.eq.s32.totalorder %s18, 0
      %p101 = por %p99, %p100
      %p102 = scmp.ne.s32.totalorder %s94, %s96
      %p103 = scmp.eq.s32.totalorder %s23, 1
      %p104 = por %p102, %p103
      %p105 = scmp.ne.s32.totalorder %s96, %s97
      %p106 = scmp.eq.s32.totalorder %s23, 0
      %p107 = por %p105, %p106
      %p108 = scmp.ne.s32.totalorder %s96, %s97
      %p109 = scmp.eq.s32.totalorder %s24, 1
      %p110 = por %p108, %p109
      %p112 = scmp.ne.s32.totalorder %s97, %s111
      %p113 = scmp.eq.s32.totalorder %s24, 0
      %p114 = por %p112, %p113
      %s116 = sadd.s32 %s115, 1
      %p119 = scmp.eq.s32.totalorder %s18, 1
      %p120 = scmp.ne.s32.totalorder %s115, %s117
      %p121 = scmp.eq.s32.totalorder %s18, 0
      %p122 = por %p120, %p121
      %p123 = scmp.ne.s32.totalorder %s115, %s117
      %p124 = scmp.eq.s32.totalorder %s23, 1
      %p125 = por %p123, %p124
      %p126 = scmp.ne.s32.totalorder %s117, %s118
      %p127 = scmp.eq.s32.totalorder %s23, 0
      %p128 = por %p126, %p127
      %p129 = scmp.ne.s32.totalorder %s117, %s118
      %p130 = scmp.eq.s32.totalorder %s24, 1
      %p131 = por %p129, %p130
      %p133 = scmp.ne.s32.totalorder %s118, %s132
      %p134 = scmp.eq.s32.totalorder %s24, 0
      %p135 = por %p133, %p134
      %s137 = sadd.s32 %s136, 1
      %p140 = scmp.eq.s32.totalorder %s18, 1
      %p141 = scmp.ne.s32.totalorder %s136, %s138
      %p142 = scmp.eq.s32.totalorder %s18, 0
      %p143 = por %p141, %p142
      %p144 = scmp.ne.s32.totalorder %s136, %s138
      %p145 = scmp.eq.s32.totalorder %s23, 1
      %p146 = por %p144, %p145
      %p147 = scmp.ne.s32.totalorder %s138, %s139
      %p148 = scmp.eq.s32.totalorder %s23, 0
      %p149 = por %p147, %p148
      %p150 = scmp.ne.s32.totalorder %s138, %s139
      %p151 = scmp.eq.s32.totalorder %s24, 1
      %p152 = por %p150, %p151
      %p154 = scmp.ne.s32.totalorder %s139, %s153
      %p155 = scmp.eq.s32.totalorder %s24, 0
      %p156 = por %p154, %p155
      %s158 = sadd.s32 %s157, 1
      %p161 = scmp.eq.s32.totalorder %s18, 1
      %p162 = scmp.ne.s32.totalorder %s157, %s159
      %p163 = scmp.eq.s32.totalorder %s18, 0
      %p164 = por %p162, %p163
      %p165 = scmp.ne.s32.totalorder %s157, %s159
      %p166 = scmp.eq.s32.totalorder %s23, 1
      %p167 = por %p165, %p166
      %p168 = scmp.ne.s32.totalorder %s159, %s160
      %p169 = scmp.eq.s32.totalorder %s23, 0
      %p170 = por %p168, %p169
      %p171 = scmp.ne.s32.totalorder %s159, %s160
      %p172 = scmp.eq.s32.totalorder %s24, 1
      %p173 = por %p171, %p172
      %p175 = scmp.ne.s32.totalorder %s160, %s174
      %p176 = scmp.eq.s32.totalorder %s24, 0
      %p177 = por %p175, %p176
      %s178 = ssub.s32 %s18, %s25
      %p179 = scmp.eq.s32.totalorder %s178, 0
      %s181 = sadd.s32 %s180, 1
      %s182 = scalar_select %p179, %s180, %s181
      %p185 = pneg %p179
      %p186 = scmp.eq.s32.totalorder %s18, 1
      %p187 = por %p185, %p186
      %p188 = scmp.ne.s32.totalorder %s180, %s183
      %p189 = scmp.eq.s32.totalorder %s18, 0
      %p190 = por %p188, %p189
      %p191 = scmp.ne.s32.totalorder %s180, %s183
      %p192 = scmp.eq.s32.totalorder %s23, 1
      %p193 = por %p191, %p192
      %p194 = scmp.ne.s32.totalorder %s183, %s184
      %p195 = scmp.eq.s32.totalorder %s23, 0
      %p196 = por %p194, %p195
      %p197 = scmp.ne.s32.totalorder %s183, %s184
      %p198 = scmp.eq.s32.totalorder %s24, 1
      %p199 = por %p197, %p198
      %p201 = scmp.ne.s32.totalorder %s184, %s200
      %p202 = scmp.eq.s32.totalorder %s24, 0
      %p203 = por %p201, %p202
      %p204 = scmp.le.s32.totalorder 1, %s18
      %p205 = scmp.lt.s32.totalorder %s18, 3
      %p206 = pnand %p204, %p205
      %p207 = pneg %p206
      // Predicated region
      $region9: #{tpu_custom_call.1} parent=5 // pred_check
        _
      $region10: #{tpu_custom_call.1} parent=5 // pred_check_branch
        %209 = sbr.rel (%p206) target = $region12
      $region11: #{tpu_custom_call.1} parent=5 // pred_region
        %s210 = ssub.s32 %s18, 1
        // Predicated region
        $region13: #{tpu_custom_call.1} parent=11 // pred_check
          %p211 = pneg %p65
        $region14: #{tpu_custom_call.1} parent=11 // pred_check_branch
          %213 = sbr.rel (%p211) target = $region16
        $region15: #{tpu_custom_call.1} parent=11 // pred_region
          %s215 = ssub.s32 1024, 1024
          %216 = vsyncadd [#allocation4], %s215
          %s217 = sshll.u32 [#allocation3], 4
          %s218 = int_to_ptr.vmem [resolvable:$true] %s217
          %223 = dma.hbm_to_vmem [thread:$0]  %s1, 1024, %s218, [#allocation4], 256, 256, 16
        $region16: #{tpu_custom_call.1} parent=11 // pred_fallthru
          _
        // Predicated region
        $region17: #{tpu_custom_call.1} parent=11 // pred_check
          %p224 = pneg %p86
        $region18: #{tpu_custom_call.1} parent=11 // pred_check_branch
          %226 = sbr.rel (%p224) target = $region20
        $region19: #{tpu_custom_call.1} parent=11 // pred_region
          _
        $region20: #{tpu_custom_call.1} parent=11 // pred_fallthru
          _
        // Predicated region
        $region21: #{tpu_custom_call.1} parent=11 // pred_check
          %p227 = pneg %p107
        $region22: #{tpu_custom_call.1} parent=11 // pred_check_branch
          %229 = sbr.rel (%p227) target = $region24
        $region23: #{tpu_custom_call.1} parent=11 // pred_region
          _
        $region24: #{tpu_custom_call.1} parent=11 // pred_fallthru
          _
        // Predicated region
        $region25: #{tpu_custom_call.1} parent=11 // pred_check
          %p230 = pneg %p128
        $region26: #{tpu_custom_call.1} parent=11 // pred_check_branch
          %232 = sbr.rel (%p230) target = $region28
        $region27: #{tpu_custom_call.1} parent=11 // pred_region
          _
        $region28: #{tpu_custom_call.1} parent=11 // pred_fallthru
          _
        // Predicated region
        $region29: #{tpu_custom_call.1} parent=11 // pred_check
          %p233 = pneg %p149
        $region30: #{tpu_custom_call.1} parent=11 // pred_check_branch
          %235 = sbr.rel (%p233) target = $region32
        $region31: #{tpu_custom_call.1} parent=11 // pred_region
          _
        $region32: #{tpu_custom_call.1} parent=11 // pred_fallthru
          _
        // Predicated region
        $region33: #{tpu_custom_call.1} parent=11 // pred_check
          %p236 = pneg %p170
        $region34: #{tpu_custom_call.1} parent=11 // pred_check_branch
          %238 = sbr.rel (%p236) target = $region36
        $region35: #{tpu_custom_call.1} parent=11 // pred_region
          _
        $region36: #{tpu_custom_call.1} parent=11 // pred_fallthru
          _
      $region12: #{tpu_custom_call.1} parent=5 // pred_fallthru
        _
      %p239 = scmp.lt.s32.totalorder %s18, 2
      // Predicated region
      $region37: #{tpu_custom_call.1} parent=5 // pred_check
        %p240 = pneg %p239
      $region38: #{tpu_custom_call.1} parent=5 // pred_check_branch
        %242 = sbr.rel (%p240) target = $region40
      $region39: #{tpu_custom_call.1} parent=5 // pred_region
        // Predicated region
        $region41: #{tpu_custom_call.1} parent=39 // pred_check
          %p243 = pneg %p38
        $region42: #{tpu_custom_call.1} parent=39 // pred_check_branch
          %245 = sbr.rel (%p243) target = $region44
        $region43: #{tpu_custom_call.1} parent=39 // pred_region
          %p246 = scmp.lt.s32.totalorder %s18, 1
          %s247 = scalar_select %p246, %s18, 1
          %s248 = smul.addr %s247, 4
          %s249 = scalar_lea.vmem %s0, %s248
        $region44: #{tpu_custom_call.1} parent=39 // pred_fallthru
          _
      $region40: #{tpu_custom_call.1} parent=5 // pred_fallthru
        _
      %p250 = scmp.le.s32.totalorder 1, %s18
      %p251 = scmp.lt.s32.totalorder %s18, 3
      %p252 = pnand %p250, %p251
      %p253 = pneg %p252
      // Predicated region
      $region45: #{tpu_custom_call.1} parent=5 // pred_check
        _
      $region46: #{tpu_custom_call.1} parent=5 // pred_check_branch
        %255 = sbr.rel (%p252) target = $region48
      $region47: #{tpu_custom_call.1} parent=5 // pred_region
        %s256 = ssub.s32 %s18, 1
        // Predicated region
        $region49: #{tpu_custom_call.1} parent=47 // pred_check
          %p257 = pneg %p65
        $region50: #{tpu_custom_call.1} parent=47 // pred_check_branch
          %259 = sbr.rel (%p257) target = $region52
        $region51: #{tpu_custom_call.1} parent=47 // pred_region
          %260 = dma.done [#allocation4], 1024
        $region52: #{tpu_custom_call.1} parent=47 // pred_fallthru
          _
        %p261 = scmp.lt.s32.totalorder %s23, 1
        %s262 = scalar_select %p261, %s23, 1
        %s263 = smul.addr %s262, 4
        %s264 = scalar_lea.vmem %s0, %s263
        %p265 = pneg %p44
        %p266 = pneg %p41
        %p267 = pneg %p65
        %p268 = pneg %p62
        %p269 = pneg %p86
        %p270 = pneg %p83
        %p271 = pneg %p107
        %p272 = pneg %p104
        %p273 = pneg %p128
        %p274 = pneg %p125
        %p275 = pneg %p149
        %p276 = pneg %p146
        %p277 = pneg %p170
        %p278 = pneg %p167
        %p279 = pneg %p196
        %p280 = pneg %p193
        %s281 = sand.u32 %s183, 1
        %s282 = scalar_lea.sflag [#allocation5], %s281
        %s283 = sand.u32 %s183, 1
        %s284 = scalar_lea.vmem [#allocation6], %s283
        %p285 = scmp.lt.s32.totalorder %s23, 1
        %s286 = scalar_select %p285, %s23, 1
        %s287 = smul.addr %s286, 4
        %s288 = scalar_lea.vmem %s0, %s287
        %v290 = vld [vmem:[%s288] sm:$0xf]
        %v291 = vld [vmem:[#allocation3] sm:$0xff]
        %v292 = vld [vmem:[#allocation3 + $0x8] sm:$0xff]
        %v293 = vld [vmem:[#allocation3 + $0x10] sm:$0xff]
        %v294 = vld [vmem:[#allocation3 + $0x18] sm:$0xff]
        %v295 = vld [vmem:[#allocation3 + $0x20] sm:$0xff]
        %v296 = vld [vmem:[#allocation3 + $0x28] sm:$0xff]
        %v297 = vld [vmem:[#allocation3 + $0x30] sm:$0xff]
        %v298 = vld [vmem:[#allocation3 + $0x38] sm:$0xff]
        %v299 = vld [vmem:[%s2] sm:$0xf]
        %v301 = vlaneseq
        %v302 = vshrl.u32 %v301, 7
        %v303 = vsub.s32 0, %v302
        %v304 = vrot.slane %v299, %v303
        %v305 = vlaneseq
        %v306 = vshrl.u32 %v305, 7
        %v307 = vsub.s32 1, %v306
        %v308 = vrot.slane %v299, %v307
        %v309 = vlaneseq
        %v310 = vshrl.u32 %v309, 7
        %v311 = vsub.s32 2, %v310
        %v312 = vrot.slane %v299, %v311
        %v313 = vlaneseq
        %v314 = vshrl.u32 %v313, 7
        %v315 = vsub.s32 3, %v314
        %v316 = vrot.slane %v299, %v315
        %v329 = vunpack.c.l.b16 %v291
        %v330 = vunpack.c.h.b16 %v291
        %v331 = vunpack.c.l.b16 %v292
        %v332 = vunpack.c.h.b16 %v292
        %v333 = vunpack.c.l.b16 %v293
        %v334 = vunpack.c.h.b16 %v293
        %v335 = vunpack.c.l.b16 %v294
        %v336 = vunpack.c.h.b16 %v294
        %v337 = vunpack.c.l.b16 %v295
        %v338 = vunpack.c.h.b16 %v295
        %v339 = vunpack.c.l.b16 %v296
        %v340 = vunpack.c.h.b16 %v296
        %v341 = vunpack.c.l.b16 %v297
        %v342 = vunpack.c.h.b16 %v297
        %v343 = vunpack.c.l.b16 %v298
        %v344 = vunpack.c.h.b16 %v298
        %v345 = vpack.c.b16 %v333, %v329
        %v346 = vpack.c.b16 %v334, %v330
        %v347 = vpack.c.b16 %v335, %v331
        %v348 = vpack.c.b16 %v336, %v332
        %v349 = vpack.c.b16 %v341, %v337
        %v350 = vpack.c.b16 %v342, %v338
        %v351 = vpack.c.b16 %v343, %v339
        %v352 = vpack.c.b16 %v344, %v340
        %vm361 = vcmask 261120
        %v363 = vsel %vm361, %v290, 0
        %365 = vmatprep.subr.bf16.mxu0 0
        %366 = vmatpush1.bf16.msra.mxu0 0
        %367 = vmatprep.subr.bf16.mxu0 0
        %368 = vmatpush1.bf16.msra.mxu0 0
        %369 = vmatprep.subr.bf16.mxu0 0
        %370 = vmatpush1.bf16.msra.mxu0 0
        %371 = vmatprep.subr.bf16.mxu0 0
        %372 = vmatpush1.bf16.msra.mxu0 0
        %373 = vmatprep.subr.bf16.mxu0 0
        %374 = vmatpush1.bf16.msra.mxu0 0
        %375 = vmatprep.subr.bf16.mxu0 0
        %376 = vmatpush1.bf16.msra.mxu0 0
        %377 = vmatprep.subr.bf16.mxu0 %v350
        %378 = vmatpush1.bf16.msra.mxu0 %v349
        %379 = vmatprep.subr.bf16.mxu0 %v346
        %380 = vmatpush1.bf16.msra.mxu0 %v345
        %381 = vmatprep.subr.bf16.mxu0 0
        %382 = vmatpush2.bf16.msra.mxu0 0
        %383 = vmatprep.subr.bf16.mxu0 0
        %384 = vmatpush2.bf16.msra.mxu0 0
        %385 = vmatprep.subr.bf16.mxu0 0
        %386 = vmatpush2.bf16.msra.mxu0 0
        %387 = vmatprep.subr.bf16.mxu0 0
        %388 = vmatpush2.bf16.msra.mxu0 0
        %389 = vmatprep.subr.bf16.mxu0 0
        %390 = vmatpush2.bf16.msra.mxu0 0
        %391 = vmatprep.subr.bf16.mxu0 0
        %392 = vmatpush2.bf16.msra.mxu0 0
        %393 = vmatprep.subr.bf16.mxu0 0
        %394 = vmatpush2.bf16.msra.mxu0 0
        %395 = vmatprep.subr.bf16.mxu0 0
        %396 = vmatpush2.bf16.msra.mxu0 0
        %397 = vmatprep.mubr.bf16.mxu0 0
        %398 = vmatmul.mubr.bf16.gmra.mxu0 %v363
        %v399 = vpop.f32.mrf.mxu0
        %v400 = vadd.f32 %v304, %v399
        %v401 = vpop.f32.mrf.mxu0
        %v402 = vadd.f32 %v308, %v401
        %v403 = vpop.f32.mrf.mxu0
        %v404 = vpop.f32.mrf.mxu0
        %405 = vdwg.mxu0
        %406 = vmatprep.subr.bf16.mxu0 0
        %407 = vmatpush1.bf16.msra.mxu0 0
        %408 = vmatprep.subr.bf16.mxu0 0
        %409 = vmatpush1.bf16.msra.mxu0 0
        %410 = vmatprep.subr.bf16.mxu0 0
        %411 = vmatpush1.bf16.msra.mxu0 0
        %412 = vmatprep.subr.bf16.mxu0 0
        %413 = vmatpush1.bf16.msra.mxu0 0
        %414 = vmatprep.subr.bf16.mxu0 0
        %415 = vmatpush1.bf16.msra.mxu0 0
        %416 = vmatprep.subr.bf16.mxu0 0
        %417 = vmatpush1.bf16.msra.mxu0 0
        %418 = vmatprep.subr.bf16.mxu0 %v352
        %419 = vmatpush1.bf16.msra.mxu0 %v351
        %420 = vmatprep.subr.bf16.mxu0 %v348
        %421 = vmatpush1.bf16.msra.mxu0 %v347
        %422 = vmatprep.subr.bf16.mxu0 0
        %423 = vmatpush2.bf16.msra.mxu0 0
        %424 = vmatprep.subr.bf16.mxu0 0
        %425 = vmatpush2.bf16.msra.mxu0 0
        %426 = vmatprep.subr.bf16.mxu0 0
        %427 = vmatpush2.bf16.msra.mxu0 0
        %428 = vmatprep.subr.bf16.mxu0 0
        %429 = vmatpush2.bf16.msra.mxu0 0
        %430 = vmatprep.subr.bf16.mxu0 0
        %431 = vmatpush2.bf16.msra.mxu0 0
        %432 = vmatprep.subr.bf16.mxu0 0
        %433 = vmatpush2.bf16.msra.mxu0 0
        %434 = vmatprep.subr.bf16.mxu0 0
        %435 = vmatpush2.bf16.msra.mxu0 0
        %436 = vmatprep.subr.bf16.mxu0 0
        %437 = vmatpush2.bf16.msra.mxu0 0
        %438 = vmatprep.mubr.bf16.mxu0 0
        %439 = vmatmul.mubr.bf16.gmra.mxu0 %v363
        %v440 = vpop.f32.mrf.mxu0
        %v441 = vadd.f32 %v312, %v440
        %v442 = vpop.f32.mrf.mxu0
        %v443 = vadd.f32 %v316, %v442
        %v444 = vpop.f32.mrf.mxu0
        %v445 = vpop.f32.mrf.mxu0
        %446 = vdwg.mxu0
        %v447 = vtanh.pop %v400
        %v448 = vtanh.pop %v402
        %v449 = vtanh.pop %v441
        %v450 = vtanh.pop %v443
        %v451 = vld [vmem:[%s3] sm:$0xf]
        %v453 = vlaneseq
        %v454 = vshrl.u32 %v453, 7
        %v455 = vsub.s32 0, %v454
        %v456 = vrot.slane %v451, %v455
        %v457 = vlaneseq
        %v458 = vshrl.u32 %v457, 7
        %v459 = vsub.s32 1, %v458
        %v460 = vrot.slane %v451, %v459
        %v461 = vlaneseq
        %v462 = vshrl.u32 %v461, 7
        %v463 = vsub.s32 2, %v462
        %v464 = vrot.slane %v451, %v463
        %v465 = vlaneseq
        %v466 = vshrl.u32 %v465, 7
        %v467 = vsub.s32 3, %v466
        %v468 = vrot.slane %v451, %v467
        %v473 = vmul.f32 %v447, %v456
        %v474 = vmul.f32 %v448, %v460
        %v475 = vmul.f32 %v449, %v464
        %v476 = vmul.f32 %v450, %v468
        %v477 = vadd.f32 %v473, %v474
        %v478 = vadd.f32 %v477, %v475
        %v479 = vadd.f32 %v478, %v476
        %480 = vadd.xlane.f32.xlu0 %v479
        %v481 = vpop.xlane.xlu0 %480
        %s482 = sld [smem:[#allocation2]]
        %v483 = vstv %s482
        %v484 = vadd.f32 %v481, %v483
        %v485 = vrot.slane %v484, 4
        %v486 = vmax.f32 %v484, %v485
        %v487 = vrot.slane %v486, 2
        %v488 = vmax.f32 %v486, %v487
        %v489 = vrot.slane %v488, 1
        %v490 = vmax.f32 %v488, %v489
        %v491 = vsub.f32 %v484, %v490
        %v492 = vmul.f32 %v491, 1.442695
        %v493 = vpow.pop %v492
        %v494 = vrot.slane %v493, 4
        %v495 = vadd.f32 %v493, %v494
        %v496 = vrot.slane %v495, 2
        %v497 = vadd.f32 %v495, %v496
        %v498 = vrot.slane %v497, 1
        %v499 = vadd.f32 %v497, %v498
        %v500 = vrcp.pop %v499
        %v501 = vmul.f32 %v493, %v500
        %v502 = vunpack.c.l.bf16 %v290
        %v503 = vmul.f32 %v501, %v502
        %v504 = vsel %vm361, %v503, 0.0
        %v505 = vrot.slane %v504, 4
        %v506 = vadd.f32 %v504, %v505
        %v507 = vrot.slane %v506, 2
        %v508 = vadd.f32 %v506, %v507
        %v509 = vrot.slane %v508, 1
        %v510 = vadd.f32 %v508, %v509
        %v511 = vld [vmem:[%s5] sm:$0xff]
        %v512 = vld [vmem:[%s5 + $0x8] sm:$0xff]
        %v513 = vld [vmem:[%s5 + $0x10] sm:$0xff]
        %v514 = vld [vmem:[%s5 + $0x18] sm:$0xff]
        %v515 = vld [vmem:[%s6] sm:$0x1]
        %v517 = vsel %vm361, %v510, 0
        %519 = vmatprep.subr.mxu0 0.0
        %520 = vmatpush1.msra.mxu0 0.0
        %521 = vmatprep.subr.mxu0 0.0
        %522 = vmatpush1.msra.mxu0 0.0
        %523 = vmatprep.subr.mxu0 0.0
        %524 = vmatpush1.msra.mxu0 0.0
        %525 = vmatprep.subr.mxu0 0.0
        %526 = vmatpush1.msra.mxu0 0.0
        %527 = vmatprep.subr.mxu0 0.0
        %528 = vmatpush1.msra.mxu0 0.0
        %529 = vmatprep.subr.mxu0 0.0
        %530 = vmatpush1.msra.mxu0 0.0
        %531 = vmatprep.subr.mxu0 0.0
        %532 = vmatpush1.msra.mxu0 0.0
        %533 = vmatprep.subr.mxu0 0.0
        %534 = vmatpush1.msra.mxu0 0.0
        %535 = vmatprep.subr.mxu0 0.0
        %536 = vmatpush1.msra.mxu0 0.0
        %537 = vmatprep.subr.mxu0 0.0
        %538 = vmatpush1.msra.mxu0 0.0
        %539 = vmatprep.subr.mxu0 0.0
        %540 = vmatpush1.msra.mxu0 0.0
        %541 = vmatprep.subr.mxu0 0.0
        %542 = vmatpush1.msra.mxu0 0.0
        %543 = vmatprep.subr.mxu0 0.0
        %544 = vmatpush1.msra.mxu0 %v514
        %545 = vmatprep.subr.mxu0 0.0
        %546 = vmatpush1.msra.mxu0 %v513
        %547 = vmatprep.subr.mxu0 0.0
        %548 = vmatpush1.msra.mxu0 %v512
        %549 = vmatprep.subr.mxu0 0.0
        %550 = vmatpush1.msra.mxu0 %v511
        %551 = vmatprep.subr.mxu0 0.0
        %552 = vmatpush2.msra.mxu0 0.0
        %553 = vmatprep.subr.mxu0 0.0
        %554 = vmatpush2.msra.mxu0 0.0
        %555 = vmatprep.subr.mxu0 0.0
        %556 = vmatpush2.msra.mxu0 0.0
        %557 = vmatprep.subr.mxu0 0.0
        %558 = vmatpush2.msra.mxu0 0.0
        %559 = vmatprep.subr.mxu0 0.0
        %560 = vmatpush2.msra.mxu0 0.0
        %561 = vmatprep.subr.mxu0 0.0
        %562 = vmatpush2.msra.mxu0 0.0
        %563 = vmatprep.subr.mxu0 0.0
        %564 = vmatpush2.msra.mxu0 0.0
        %565 = vmatprep.subr.mxu0 0.0
        %566 = vmatpush2.msra.mxu0 0.0
        %567 = vmatprep.subr.mxu0 0.0
        %568 = vmatpush2.msra.mxu0 0.0
        %569 = vmatprep.subr.mxu0 0.0
        %570 = vmatpush2.msra.mxu0 0.0
        %571 = vmatprep.subr.mxu0 0.0
        %572 = vmatpush2.msra.mxu0 0.0
        %573 = vmatprep.subr.mxu0 0.0
        %574 = vmatpush2.msra.mxu0 0.0
        %575 = vmatprep.subr.mxu0 0.0
        %576 = vmatpush2.msra.mxu0 0.0
        %577 = vmatprep.subr.mxu0 0.0
        %578 = vmatpush2.msra.mxu0 0.0
        %579 = vmatprep.subr.mxu0 0.0
        %580 = vmatpush2.msra.mxu0 0.0
        %581 = vmatprep.subr.mxu0 0.0
        %582 = vmatpush2.msra.mxu0 0.0
        %583 = vmatprep.mubr.f32.mxu0 0.0
        %584 = vmatmul.mubr.f32.gmra.mxu0 %v517
        %v585 = vpop.f32.mrf.mxu0
        %v586 = vadd.f32 %v515, %v585
        %v587 = vpop.f32.mrf.mxu0
        %588 = vdwg.mxu0
        %vm589 = vcmask 8192
        %590 = vst.msk [vmem:[%s284] sm:$0x1] %vm589, %v586
        %s591 = sand.u32 %s183, 1
        %s592 = scalar_lea.sflag [#allocation5], %s591
        %s593 = sand.u32 %s183, 1
        %s594 = scalar_lea.vmem [#allocation6], %s593
        // Predicated region
        $region53: #{tpu_custom_call.1} parent=47 // pred_check
          %p595 = pneg %p193
        $region54: #{tpu_custom_call.1} parent=47 // pred_check_branch
          %597 = sbr.rel (%p595) target = $region56
        $region55: #{tpu_custom_call.1} parent=47 // pred_region
          %s599 = ssub.s32 16, 16
          %600 = vsyncadd %s592, %s599
          %s601 = smul.addr %s23, 16
          %s602 = scalar_lea.hbm %s7, %s601
          %s604 = sshll.u32 %s594, 4
          %s605 = int_to_ptr.vmem [resolvable:$true] %s604
          %607 = dma.vmem_to_hbm [thread:$0]  %s605, 16, %s602, %s592
        $region56: #{tpu_custom_call.1} parent=47 // pred_fallthru
          _
      $region48: #{tpu_custom_call.1} parent=5 // pred_fallthru
        _
      %p608 = scmp.le.s32.totalorder 2, %s18
      // Predicated region
      $region57: #{tpu_custom_call.1} parent=5 // pred_check
        %p609 = pneg %p608
      $region58: #{tpu_custom_call.1} parent=5 // pred_check_branch
        %611 = sbr.rel (%p609) target = $region60
      $region59: #{tpu_custom_call.1} parent=5 // pred_region
        %s612 = ssub.s32 %s18, 2
        // Predicated region
        $region61: #{tpu_custom_call.1} parent=59 // pred_check
          %p613 = pneg %p199
        $region62: #{tpu_custom_call.1} parent=59 // pred_check_branch
          %615 = sbr.rel (%p613) target = $region64
        $region63: #{tpu_custom_call.1} parent=59 // pred_region
          %s616 = sand.u32 %s184, 1
          %s617 = scalar_lea.sflag [#allocation5], %s616
          %s618 = sand.u32 %s184, 1
          %s619 = scalar_lea.vmem [#allocation6], %s618
          %620 = dma.done %s617, 16
        $region64: #{tpu_custom_call.1} parent=59 // pred_fallthru
          _
      $region60: #{tpu_custom_call.1} parent=5 // pred_fallthru
        _
    $region6: #{tpu_custom_call.1} parent=1 // loop_footer
      %s22 = sadd.s32 1, %s18
    $region7: #{tpu_custom_call.1} parent=1 // loop_footer_branch
      %17 = sbr.rel target = $region3
    $region8: #{tpu_custom_call.1} parent=1 // loop_exit
      _
    %621 = vsyncpa [#allocation4], 1
    %s622 = scalar_lea.sflag [#allocation4], 1
    %623 = vsyncpa %s622, 1
    %624 = vsyncpa [#allocation5], 1
    %s625 = scalar_lea.sflag [#allocation5], 1
    %626 = vsyncpa %s625, 1

// kernel: tpu_custom_call.1
$region0: #{tpu_custom_call.1}
  #allocation0 [shape = 'u32[]', space=smem, size = 0x4, offset = 0x4, fixed_abs, tag = 'smem constant byte address 0x4 - core index']
  #allocation1 [shape = 'u32[144,128]{1,0:T(1,128)}', space=vmem, size = 0x12000, scoped, tag = 'internal scratch']
  #allocation2 [shape = 'f32[1,1]{1,0:T(1,128)S(6)}', space=smem, size = 0x200, scoped, tag = 'scoped memory for tpu_custom_call.1']
  %s0 = inlined_call_operand.vmem [shape: bf16[2,8,32], index: 0, kind: input, shape index: {}]
  %s1 = inlined_call_operand.hbm [shape: bf16[32,512], index: 1, kind: input, shape index: {}]
  %s2 = inlined_call_operand.vmem [shape: f32[1,512], index: 2, kind: input, shape index: {}]
  %s3 = inlined_call_operand.vmem [shape: f32[1,512], index: 3, kind: input, shape index: {}]
  %s4 = inlined_call_operand.<no memory space> [shape: f32[1,1], index: 4, kind: input, shape index: {}]
  %s5 = inlined_call_operand.vmem [shape: f32[32,2], index: 5, kind: input, shape index: {}]
  %s6 = inlined_call_operand.vmem [shape: f32[1,2], index: 6, kind: input, shape index: {}]
  %s7 = inlined_call_operand.hbm [shape: f32[2,1,2], index: 7, kind: output, shape index: {}]
  %s8 = sld [smem:[#allocation0]]
  $region65: #{tpu_custom_call.1} parent=0
    _
  %s10 = ssub.s32 1, %s8
  %s11 = scalar_select 0, %s10, %s8
  %12 = sst [smem:[#allocation2]] %s4
  $region1: #{tpu_custom_call.1} parent=0
    #allocation3 [shape = 'u8[32768]{0}', space=vmem, size = 0x8000, scoped, tag = 'input window, operand 1, single buffered']
    #allocation4 [shape = 's32[2]{0}', space=sflag, size = 0x8, scoped, tag = 'scoped memory for tpu_custom_call.1']
    #allocation5 [shape = 's32[2]{0}', space=sflag, size = 0x8, scoped, tag = 'scoped memory for tpu_custom_call.1']
    #allocation6 [shape = 'u8[1024]{0}', space=vmem, size = 0x400, scoped, tag = 'output window, operand 0']
    %13 = vsyncpa [#allocation4], 0
    %14 = vsyncpa [#allocation5], 0
    %s15 = scalar_lea.sflag [#allocation5], 1
    %16 = vsyncpa %s15, 0
    loop: start=0, step=1, limit=4
    $region2: #{tpu_custom_call.1} parent=1 // loop_pre_header
      _
    $region3: #{tpu_custom_call.1} parent=1 // loop_header
      %s18 = sphi 0, %s22
      %p19 = scmp.ge.s32.totalorder %s18, 4
      %s28 = sphi 0, %s30
      %s31 = sphi 0, %s28
      %s32 = sphi 0, %s31
      %s48 = sphi 0, %s32
      %s52 = sphi 0, %s52
      %s54 = sphi 0, %s52
      %s55 = sphi 0, %s54
      %s69 = sphi 0, %s55
      %s73 = sphi 0, %s73
      %s75 = sphi 0, %s73
      %s76 = sphi 0, %s75
      %s90 = sphi 0, %s76
      %s94 = sphi 0, %s94
      %s96 = sphi 0, %s94
      %s97 = sphi 0, %s96
      %s111 = sphi 0, %s97
      %s115 = sphi 0, %s115
      %s117 = sphi 0, %s115
      %s118 = sphi 0, %s117
      %s132 = sphi 0, %s118
      %s136 = sphi 0, %s136
      %s138 = sphi 0, %s136
      %s139 = sphi 0, %s138
      %s153 = sphi 0, %s139
      %s157 = sphi 0, %s157
      %s159 = sphi 0, %s157
      %s160 = sphi 0, %s159
      %s174 = sphi 0, %s160
      %s180 = sphi 0, %s182
      %s183 = sphi 0, %s180
      %s184 = sphi 0, %s183
      %s200 = sphi 0, %s184
    $region4: #{tpu_custom_call.1} parent=1 // loop_header_branch
      %21 = sbr.rel (%p19) target = $region8
    $region5: #{tpu_custom_call.1} parent=1 // loop_body
      %s23 = ssub.s32 %s18, 1
      %s24 = ssub.s32 %s18, 2
      %s25 = sadd.s32 %s18, 1
      %s26 = ssub.s32 %s18, %s25
      %p27 = scmp.eq.s32.totalorder %s26, 0
      %s29 = sadd.s32 %s28, 1
      %s30 = scalar_select %p27, %s28, %s29
      %p33 = pneg %p27
      %p34 = scmp.eq.s32.totalorder %s18, 1
      %p35 = por %p33, %p34
      %p36 = scmp.ne.s32.totalorder %s28, %s31
      %p37 = scmp.eq.s32.totalorder %s18, 0
      %p38 = por %p36, %p37
      %p39 = scmp.ne.s32.totalorder %s28, %s31
      %p40 = scmp.eq.s32.totalorder %s23, 1
      %p41 = por %p39, %p40
      %p42 = scmp.ne.s32.totalorder %s31, %s32
      %p43 = scmp.eq.s32.totalorder %s23, 0
      %p44 = por %p42, %p43
      %p45 = scmp.ne.s32.totalorder %s31, %s32
      %p46 = scmp.eq.s32.totalorder %s24, 1
      %p47 = por %p45, %p46
      %p49 = scmp.ne.s32.totalorder %s32, %s48
      %p50 = scmp.eq.s32.totalorder %s24, 0
      %p51 = por %p49, %p50
      %s53 = sadd.s32 %s52, 1
      %p56 = scmp.eq.s32.totalorder %s18, 1
      %p57 = scmp.ne.s32.totalorder %s52, %s54
      %p58 = scmp.eq.s32.totalorder %s18, 0
      %p59 = por %p57, %p58
      %p60 = scmp.ne.s32.totalorder %s52, %s54
      %p61 = scmp.eq.s32.totalorder %s23, 1
      %p62 = por %p60, %p61
      %p63 = scmp.ne.s32.totalorder %s54, %s55
      %p64 = scmp.eq.s32.totalorder %s23, 0
      %p65 = por %p63, %p64
      %p66 = scmp.ne.s32.totalorder %s54, %s55
      %p67 = scmp.eq.s32.totalorder %s24, 1
      %p68 = por %p66, %p67
      %p70 = scmp.ne.s32.totalorder %s55, %s69
      %p71 = scmp.eq.s32.totalorder %s24, 0
      %p72 = por %p70, %p71
      %s74 = sadd.s32 %s73, 1
      %p77 = scmp.eq.s32.totalorder %s18, 1
      %p78 = scmp.ne.s32.totalorder %s73, %s75
      %p79 = scmp.eq.s32.totalorder %s18, 0
      %p80 = por %p78, %p79
      %p81 = scmp.ne.s32.totalorder %s73, %s75
      %p82 = scmp.eq.s32.totalorder %s23, 1
      %p83 = por %p81, %p82
      %p84 = scmp.ne.s32.totalorder %s75, %s76
      %p85 = scmp.eq.s32.totalorder %s23, 0
      %p86 = por %p84, %p85
      %p87 = scmp.ne.s32.totalorder %s75, %s76
      %p88 = scmp.eq.s32.totalorder %s24, 1
      %p89 = por %p87, %p88
      %p91 = scmp.ne.s32.totalorder %s76, %s90
      %p92 = scmp.eq.s32.totalorder %s24, 0
      %p93 = por %p91, %p92
      %s95 = sadd.s32 %s94, 1
      %p98 = scmp.eq.s32.totalorder %s18, 1
      %p99 = scmp.ne.s32.totalorder %s94, %s96
      %p100 = scmp.eq.s32.totalorder %s18, 0
      %p101 = por %p99, %p100
      %p102 = scmp.ne.s32.totalorder %s94, %s96
      %p103 = scmp.eq.s32.totalorder %s23, 1
      %p104 = por %p102, %p103
      %p105 = scmp.ne.s32.totalorder %s96, %s97
      %p106 = scmp.eq.s32.totalorder %s23, 0
      %p107 = por %p105, %p106
      %p108 = scmp.ne.s32.totalorder %s96, %s97
      %p109 = scmp.eq.s32.totalorder %s24, 1
      %p110 = por %p108, %p109
      %p112 = scmp.ne.s32.totalorder %s97, %s111
      %p113 = scmp.eq.s32.totalorder %s24, 0
      %p114 = por %p112, %p113
      %s116 = sadd.s32 %s115, 1
      %p119 = scmp.eq.s32.totalorder %s18, 1
      %p120 = scmp.ne.s32.totalorder %s115, %s117
      %p121 = scmp.eq.s32.totalorder %s18, 0
      %p122 = por %p120, %p121
      %p123 = scmp.ne.s32.totalorder %s115, %s117
      %p124 = scmp.eq.s32.totalorder %s23, 1
      %p125 = por %p123, %p124
      %p126 = scmp.ne.s32.totalorder %s117, %s118
      %p127 = scmp.eq.s32.totalorder %s23, 0
      %p128 = por %p126, %p127
      %p129 = scmp.ne.s32.totalorder %s117, %s118
      %p130 = scmp.eq.s32.totalorder %s24, 1
      %p131 = por %p129, %p130
      %p133 = scmp.ne.s32.totalorder %s118, %s132
      %p134 = scmp.eq.s32.totalorder %s24, 0
      %p135 = por %p133, %p134
      %s137 = sadd.s32 %s136, 1
      %p140 = scmp.eq.s32.totalorder %s18, 1
      %p141 = scmp.ne.s32.totalorder %s136, %s138
      %p142 = scmp.eq.s32.totalorder %s18, 0
      %p143 = por %p141, %p142
      %p144 = scmp.ne.s32.totalorder %s136, %s138
      %p145 = scmp.eq.s32.totalorder %s23, 1
      %p146 = por %p144, %p145
      %p147 = scmp.ne.s32.totalorder %s138, %s139
      %p148 = scmp.eq.s32.totalorder %s23, 0
      %p149 = por %p147, %p148
      %p150 = scmp.ne.s32.totalorder %s138, %s139
      %p151 = scmp.eq.s32.totalorder %s24, 1
      %p152 = por %p150, %p151
      %p154 = scmp.ne.s32.totalorder %s139, %s153
      %p155 = scmp.eq.s32.totalorder %s24, 0
      %p156 = por %p154, %p155
      %s158 = sadd.s32 %s157, 1
      %p161 = scmp.eq.s32.totalorder %s18, 1
      %p162 = scmp.ne.s32.totalorder %s157, %s159
      %p163 = scmp.eq.s32.totalorder %s18, 0
      %p164 = por %p162, %p163
      %p165 = scmp.ne.s32.totalorder %s157, %s159
      %p166 = scmp.eq.s32.totalorder %s23, 1
      %p167 = por %p165, %p166
      %p168 = scmp.ne.s32.totalorder %s159, %s160
      %p169 = scmp.eq.s32.totalorder %s23, 0
      %p170 = por %p168, %p169
      %p171 = scmp.ne.s32.totalorder %s159, %s160
      %p172 = scmp.eq.s32.totalorder %s24, 1
      %p173 = por %p171, %p172
      %p175 = scmp.ne.s32.totalorder %s160, %s174
      %p176 = scmp.eq.s32.totalorder %s24, 0
      %p177 = por %p175, %p176
      %s178 = ssub.s32 %s18, %s25
      %p179 = scmp.eq.s32.totalorder %s178, 0
      %s181 = sadd.s32 %s180, 1
      %s182 = scalar_select %p179, %s180, %s181
      %p185 = pneg %p179
      %p186 = scmp.eq.s32.totalorder %s18, 1
      %p187 = por %p185, %p186
      %p188 = scmp.ne.s32.totalorder %s180, %s183
      %p189 = scmp.eq.s32.totalorder %s18, 0
      %p190 = por %p188, %p189
      %p191 = scmp.ne.s32.totalorder %s180, %s183
      %p192 = scmp.eq.s32.totalorder %s23, 1
      %p193 = por %p191, %p192
      %p194 = scmp.ne.s32.totalorder %s183, %s184
      %p195 = scmp.eq.s32.totalorder %s23, 0
      %p196 = por %p194, %p195
      %p197 = scmp.ne.s32.totalorder %s183, %s184
      %p198 = scmp.eq.s32.totalorder %s24, 1
      %p199 = por %p197, %p198
      %p201 = scmp.ne.s32.totalorder %s184, %s200
      %p202 = scmp.eq.s32.totalorder %s24, 0
      %p203 = por %p201, %p202
      %p204 = scmp.le.s32.totalorder 1, %s18
      %p205 = scmp.lt.s32.totalorder %s18, 3
      %p206 = pnand %p204, %p205
      %p207 = pneg %p206
      // Predicated region
      $region9: #{tpu_custom_call.1} parent=5 // pred_check
        _
      $region10: #{tpu_custom_call.1} parent=5 // pred_check_branch
        %209 = sbr.rel (%p206) target = $region12
      $region11: #{tpu_custom_call.1} parent=5 // pred_region
        %s210 = ssub.s32 %s18, 1
        // Predicated region
        $region13: #{tpu_custom_call.1} parent=11 // pred_check
          %p211 = pneg %p65
        $region14: #{tpu_custom_call.1} parent=11 // pred_check_branch
          %213 = sbr.rel (%p211) target = $region16
        $region15: #{tpu_custom_call.1} parent=11 // pred_region
          %s215 = ssub.s32 1024, 1024
          %216 = vsyncadd [#allocation4], %s215
          %s217 = sshll.u32 [#allocation3], 4
          %s218 = int_to_ptr.vmem [resolvable:$true] %s217
          %223 = dma.hbm_to_vmem [thread:$0]  %s1, 1024, %s218, [#allocation4], 256, 256, 16
        $region16: #{tpu_custom_call.1} parent=11 // pred_fallthru
          _
        // Predicated region
        $region17: #{tpu_custom_call.1} parent=11 // pred_check
          %p224 = pneg %p86
        $region18: #{tpu_custom_call.1} parent=11 // pred_check_branch
          %226 = sbr.rel (%p224) target = $region20
        $region19: #{tpu_custom_call.1} parent=11 // pred_region
          _
        $region20: #{tpu_custom_call.1} parent=11 // pred_fallthru
          _
        // Predicated region
        $region21: #{tpu_custom_call.1} parent=11 // pred_check
          %p227 = pneg %p107
        $region22: #{tpu_custom_call.1} parent=11 // pred_check_branch
          %229 = sbr.rel (%p227) target = $region24
        $region23: #{tpu_custom_call.1} parent=11 // pred_region
          _
        $region24: #{tpu_custom_call.1} parent=11 // pred_fallthru
          _
        // Predicated region
        $region25: #{tpu_custom_call.1} parent=11 // pred_check
          %p230 = pneg %p128
        $region26: #{tpu_custom_call.1} parent=11 // pred_check_branch
          %232 = sbr.rel (%p230) target = $region28
        $region27: #{tpu_custom_call.1} parent=11 // pred_region
          _
        $region28: #{tpu_custom_call.1} parent=11 // pred_fallthru
          _
        // Predicated region
        $region29: #{tpu_custom_call.1} parent=11 // pred_check
          %p233 = pneg %p149
        $region30: #{tpu_custom_call.1} parent=11 // pred_check_branch
          %235 = sbr.rel (%p233) target = $region32
        $region31: #{tpu_custom_call.1} parent=11 // pred_region
          _
        $region32: #{tpu_custom_call.1} parent=11 // pred_fallthru
          _
        // Predicated region
        $region33: #{tpu_custom_call.1} parent=11 // pred_check
          %p236 = pneg %p170
        $region34: #{tpu_custom_call.1} parent=11 // pred_check_branch
          %238 = sbr.rel (%p236) target = $region36
        $region35: #{tpu_custom_call.1} parent=11 // pred_region
          _
        $region36: #{tpu_custom_call.1} parent=11 // pred_fallthru
          _
      $region12: #{tpu_custom_call.1} parent=5 // pred_fallthru
        _
      %p239 = scmp.lt.s32.totalorder %s18, 2
      // Predicated region
      $region37: #{tpu_custom_call.1} parent=5 // pred_check
        %p240 = pneg %p239
      $region38: #{tpu_custom_call.1} parent=5 // pred_check_branch
        %242 = sbr.rel (%p240) target = $region40
      $region39: #{tpu_custom_call.1} parent=5 // pred_region
        // Predicated region
        $region41: #{tpu_custom_call.1} parent=39 // pred_check
          %p243 = pneg %p38
        $region42: #{tpu_custom_call.1} parent=39 // pred_check_branch
          %245 = sbr.rel (%p243) target = $region44
        $region43: #{tpu_custom_call.1} parent=39 // pred_region
          %p246 = scmp.lt.s32.totalorder %s18, 1
          %s247 = scalar_select %p246, %s18, 1
          %s248 = smul.addr %s247, 4
          %s249 = scalar_lea.vmem %s0, %s248
        $region44: #{tpu_custom_call.1} parent=39 // pred_fallthru
          _
      $region40: #{tpu_custom_call.1} parent=5 // pred_fallthru
        _
      %p250 = scmp.le.s32.totalorder 1, %s18
      %p251 = scmp.lt.s32.totalorder %s18, 3
      %p252 = pnand %p250, %p251
      %p253 = pneg %p252
      // Predicated region
      $region45: #{tpu_custom_call.1} parent=5 // pred_check
        _
      $region46: #{tpu_custom_call.1} parent=5 // pred_check_branch
        %255 = sbr.rel (%p252) target = $region48
      $region47: #{tpu_custom_call.1} parent=5 // pred_region
        %s256 = ssub.s32 %s18, 1
        // Predicated region
        $region49: #{tpu_custom_call.1} parent=47 // pred_check
          %p257 = pneg %p65
        $region50: #{tpu_custom_call.1} parent=47 // pred_check_branch
          %259 = sbr.rel (%p257) target = $region52
        $region51: #{tpu_custom_call.1} parent=47 // pred_region
          %260 = dma.done [#allocation4], 1024
        $region52: #{tpu_custom_call.1} parent=47 // pred_fallthru
          _
        %p261 = scmp.lt.s32.totalorder %s23, 1
        %s262 = scalar_select %p261, %s23, 1
        %s263 = smul.addr %s262, 4
        %s264 = scalar_lea.vmem %s0, %s263
        %p265 = pneg %p44
        %p266 = pneg %p41
        %p267 = pneg %p65
        %p268 = pneg %p62
        %p269 = pneg %p86
        %p270 = pneg %p83
        %p271 = pneg %p107
        %p272 = pneg %p104
        %p273 = pneg %p128
        %p274 = pneg %p125
        %p275 = pneg %p149
        %p276 = pneg %p146
        %p277 = pneg %p170
        %p278 = pneg %p167
        %p279 = pneg %p196
        %p280 = pneg %p193
        %s281 = sand.u32 %s183, 1
        %s282 = scalar_lea.sflag [#allocation5], %s281
        %s283 = sand.u32 %s183, 1
        %s284 = scalar_lea.vmem [#allocation6], %s283
        %p285 = scmp.lt.s32.totalorder %s23, 1
        %s286 = scalar_select %p285, %s23, 1
        %s287 = smul.addr %s286, 4
        %s288 = scalar_lea.vmem %s0, %s287
        %v290 = vld [vmem:[%s288] sm:$0xf]
        %v291 = vld [vmem:[#allocation3] sm:$0xff]
        %v292 = vld [vmem:[#allocation3 + $0x8] sm:$0xff]
        %v293 = vld [vmem:[#allocation3 + $0x10] sm:$0xff]
        %v294 = vld [vmem:[#allocation3 + $0x18] sm:$0xff]
        %v295 = vld [vmem:[#allocation3 + $0x20] sm:$0xff]
        %v296 = vld [vmem:[#allocation3 + $0x28] sm:$0xff]
        %v297 = vld [vmem:[#allocation3 + $0x30] sm:$0xff]
        %v298 = vld [vmem:[#allocation3 + $0x38] sm:$0xff]
        %v299 = vld [vmem:[%s2] sm:$0xf]
        %v301 = vlaneseq
        %v302 = vshrl.u32 %v301, 7
        %v303 = vsub.s32 0, %v302
        %v304 = vrot.slane %v299, %v303
        %v305 = vlaneseq
        %v306 = vshrl.u32 %v305, 7
        %v307 = vsub.s32 1, %v306
        %v308 = vrot.slane %v299, %v307
        %v309 = vlaneseq
        %v310 = vshrl.u32 %v309, 7
        %v311 = vsub.s32 2, %v310
        %v312 = vrot.slane %v299, %v311
        %v313 = vlaneseq
        %v314 = vshrl.u32 %v313, 7
        %v315 = vsub.s32 3, %v314
        %v316 = vrot.slane %v299, %v315
        %v329 = vunpack.c.l.b16 %v291
        %v330 = vunpack.c.h.b16 %v291
        %v331 = vunpack.c.l.b16 %v292
        %v332 = vunpack.c.h.b16 %v292
        %v333 = vunpack.c.l.b16 %v293
        %v334 = vunpack.c.h.b16 %v293
        %v335 = vunpack.c.l.b16 %v294
        %v336 = vunpack.c.h.b16 %v294
        %v337 = vunpack.c.l.b16 %v295
        %v338 = vunpack.c.h.b16 %v295
        %v339 = vunpack.c.l.b16 %v296
        %v340 = vunpack.c.h.b16 %v296
        %v341 = vunpack.c.l.b16 %v297
        %v342 = vunpack.c.h.b16 %v297
        %v343 = vunpack.c.l.b16 %v298
        %v344 = vunpack.c.h.b16 %v298
        %v345 = vpack.c.b16 %v333, %v329
        %v346 = vpack.c.b16 %v334, %v330
        %v347 = vpack.c.b16 %v335, %v331
        %v348 = vpack.c.b16 %v336, %v332
        %v349 = vpack.c.b16 %v341, %v337
        %v350 = vpack.c.b16 %v342, %v338
        %v351 = vpack.c.b16 %v343, %v339
        %v352 = vpack.c.b16 %v344, %v340
        %vm361 = vcmask 261120
        %v363 = vsel %vm361, %v290, 0
        %365 = vmatprep.subr.bf16.mxu0 0
        %366 = vmatpush1.bf16.msra.mxu0 0
        %367 = vmatprep.subr.bf16.mxu0 0
        %368 = vmatpush1.bf16.msra.mxu0 0
        %369 = vmatprep.subr.bf16.mxu0 0
        %370 = vmatpush1.bf16.msra.mxu0 0
        %371 = vmatprep.subr.bf16.mxu0 0
        %372 = vmatpush1.bf16.msra.mxu0 0
        %373 = vmatprep.subr.bf16.mxu0 0
        %374 = vmatpush1.bf16.msra.mxu0 0
        %375 = vmatprep.subr.bf16.mxu0 0
        %376 = vmatpush1.bf16.msra.mxu0 0
        %377 = vmatprep.subr.bf16.mxu0 %v350
        %378 = vmatpush1.bf16.msra.mxu0 %v349
        %379 = vmatprep.subr.bf16.mxu0 %v346
        %380 = vmatpush1.bf16.msra.mxu0 %v345
        %381 = vmatprep.subr.bf16.mxu0 0
        %382 = vmatpush2.bf16.msra.mxu0 0
        %383 = vmatprep.subr.bf16.mxu0 0
        %384 = vmatpush2.bf16.msra.mxu0 0
        %385 = vmatprep.subr.bf16.mxu0 0
        %386 = vmatpush2.bf16.msra.mxu0 0
        %387 = vmatprep.subr.bf16.mxu0 0
        %388 = vmatpush2.bf16.msra.mxu0 0
        %389 = vmatprep.subr.bf16.mxu0 0
        %390 = vmatpush2.bf16.msra.mxu0 0
        %391 = vmatprep.subr.bf16.mxu0 0
        %392 = vmatpush2.bf16.msra.mxu0 0
        %393 = vmatprep.subr.bf16.mxu0 0
        %394 = vmatpush2.bf16.msra.mxu0 0
        %395 = vmatprep.subr.bf16.mxu0 0
        %396 = vmatpush2.bf16.msra.mxu0 0
        %397 = vmatprep.mubr.bf16.mxu0 0
        %398 = vmatmul.mubr.bf16.gmra.mxu0 %v363
        %v399 = vpop.f32.mrf.mxu0
        %v400 = vadd.f32 %v304, %v399
        %v401 = vpop.f32.mrf.mxu0
        %v402 = vadd.f32 %v308, %v401
        %v403 = vpop.f32.mrf.mxu0
        %v404 = vpop.f32.mrf.mxu0
        %405 = vdwg.mxu0
        %406 = vmatprep.subr.bf16.mxu0 0
        %407 = vmatpush1.bf16.msra.mxu0 0
        %408 = vmatprep.subr.bf16.mxu0 0
        %409 = vmatpush1.bf16.msra.mxu0 0
        %410 = vmatprep.subr.bf16.mxu0 0
        %411 = vmatpush1.bf16.msra.mxu0 0
        %412 = vmatprep.subr.bf16.mxu0 0
        %413 = vmatpush1.bf16.msra.mxu0 0
        %414 = vmatprep.subr.bf16.mxu0 0
        %415 = vmatpush1.bf16.msra.mxu0 0
        %416 = vmatprep.subr.bf16.mxu0 0
        %417 = vmatpush1.bf16.msra.mxu0 0
        %418 = vmatprep.subr.bf16.mxu0 %v352
        %419 = vmatpush1.bf16.msra.mxu0 %v351
        %420 = vmatprep.subr.bf16.mxu0 %v348
        %421 = vmatpush1.bf16.msra.mxu0 %v347
        %422 = vmatprep.subr.bf16.mxu0 0
        %423 = vmatpush2.bf16.msra.mxu0 0
        %424 = vmatprep.subr.bf16.mxu0 0
        %425 = vmatpush2.bf16.msra.mxu0 0
        %426 = vmatprep.subr.bf16.mxu0 0
        %427 = vmatpush2.bf16.msra.mxu0 0
        %428 = vmatprep.subr.bf16.mxu0 0
        %429 = vmatpush2.bf16.msra.mxu0 0
        %430 = vmatprep.subr.bf16.mxu0 0
        %431 = vmatpush2.bf16.msra.mxu0 0
        %432 = vmatprep.subr.bf16.mxu0 0
        %433 = vmatpush2.bf16.msra.mxu0 0
        %434 = vmatprep.subr.bf16.mxu0 0
        %435 = vmatpush2.bf16.msra.mxu0 0
        %436 = vmatprep.subr.bf16.mxu0 0
        %437 = vmatpush2.bf16.msra.mxu0 0
        %438 = vmatprep.mubr.bf16.mxu0 0
        %439 = vmatmul.mubr.bf16.gmra.mxu0 %v363
        %v440 = vpop.f32.mrf.mxu0
        %v441 = vadd.f32 %v312, %v440
        %v442 = vpop.f32.mrf.mxu0
        %v443 = vadd.f32 %v316, %v442
        %v444 = vpop.f32.mrf.mxu0
        %v445 = vpop.f32.mrf.mxu0
        %446 = vdwg.mxu0
        %v447 = vtanh.pop %v400
        %v448 = vtanh.pop %v402
        %v449 = vtanh.pop %v441
        %v450 = vtanh.pop %v443
        %v451 = vld [vmem:[%s3] sm:$0xf]
        %v453 = vlaneseq
        %v454 = vshrl.u32 %v453, 7
        %v455 = vsub.s32 0, %v454
        %v456 = vrot.slane %v451, %v455
        %v457 = vlaneseq
        %v458 = vshrl.u32 %v457, 7
        %v459 = vsub.s32 1, %v458
        %v460 = vrot.slane %v451, %v459
        %v461 = vlaneseq
        %v462 = vshrl.u32 %v461, 7
        %v463 = vsub.s32 2, %v462
        %v464 = vrot.slane %v451, %v463
        %v465 = vlaneseq
        %v466 = vshrl.u32 %v465, 7
        %v467 = vsub.s32 3, %v466
        %v468 = vrot.slane %v451, %v467
        %v473 = vmul.f32 %v447, %v456
        %v474 = vmul.f32 %v448, %v460
        %v475 = vmul.f32 %v449, %v464
        %v476 = vmul.f32 %v450, %v468
        %v477 = vadd.f32 %v473, %v474
        %v478 = vadd.f32 %v477, %v475
        %v479 = vadd.f32 %v478, %v476
        %480 = vadd.xlane.f32.xlu0 %v479
        %v481 = vpop.xlane.xlu0 %480
        %s482 = sld [smem:[#allocation2]]
        %v483 = vstv %s482
        %v484 = vadd.f32 %v481, %v483
        %v485 = vrot.slane %v484, 4
        %v486 = vmax.f32 %v484, %v485
        %v487 = vrot.slane %v486, 2
        %v488 = vmax.f32 %v486, %v487
        %v489 = vrot.slane %v488, 1
        %v490 = vmax.f32 %v488, %v489
        %v491 = vsub.f32 %v484, %v490
        %v492 = vmul.f32 %v491, 1.442695
        %v493 = vpow.pop %v492
        %v494 = vrot.slane %v493, 4
        %v495 = vadd.f32 %v493, %v494
        %v496 = vrot.slane %v495, 2
        %v497 = vadd.f32 %v495, %v496
        %v498 = vrot.slane %v497, 1
        %v499 = vadd.f32 %v497, %v498
        %v500 = vrcp.pop %v499
        %v501 = vmul.f32 %v493, %v500
        %v502 = vunpack.c.l.bf16 %v290
        %v503 = vmul.f32 %v501, %v502
        %v504 = vsel %vm361, %v503, 0.0
        %v505 = vrot.slane %v504, 4
        %v506 = vadd.f32 %v504, %v505
        %v507 = vrot.slane %v506, 2
        %v508 = vadd.f32 %v506, %v507
        %v509 = vrot.slane %v508, 1
        %v510 = vadd.f32 %v508, %v509
        %v511 = vld [vmem:[%s5] sm:$0xff]
        %v512 = vld [vmem:[%s5 + $0x8] sm:$0xff]
        %v513 = vld [vmem:[%s5 + $0x10] sm:$0xff]
        %v514 = vld [vmem:[%s5 + $0x18] sm:$0xff]
        %v515 = vld [vmem:[%s6] sm:$0x1]
        %v517 = vsel %vm361, %v510, 0
        %519 = vmatprep.subr.mxu0 0.0
        %520 = vmatpush1.msra.mxu0 0.0
        %521 = vmatprep.subr.mxu0 0.0
        %522 = vmatpush1.msra.mxu0 0.0
        %523 = vmatprep.subr.mxu0 0.0
        %524 = vmatpush1.msra.mxu0 0.0
        %525 = vmatprep.subr.mxu0 0.0
        %526 = vmatpush1.msra.mxu0 0.0
        %527 = vmatprep.subr.mxu0 0.0
        %528 = vmatpush1.msra.mxu0 0.0
        %529 = vmatprep.subr.mxu0 0.0
        %530 = vmatpush1.msra.mxu0 0.0
        %531 = vmatprep.subr.mxu0 0.0
        %532 = vmatpush1.msra.mxu0 0.0
        %533 = vmatprep.subr.mxu0 0.0
        %534 = vmatpush1.msra.mxu0 0.0
        %535 = vmatprep.subr.mxu0 0.0
        %536 = vmatpush1.msra.mxu0 0.0
        %537 = vmatprep.subr.mxu0 0.0
        %538 = vmatpush1.msra.mxu0 0.0
        %539 = vmatprep.subr.mxu0 0.0
        %540 = vmatpush1.msra.mxu0 0.0
        %541 = vmatprep.subr.mxu0 0.0
        %542 = vmatpush1.msra.mxu0 0.0
        %543 = vmatprep.subr.mxu0 0.0
        %544 = vmatpush1.msra.mxu0 %v514
        %545 = vmatprep.subr.mxu0 0.0
        %546 = vmatpush1.msra.mxu0 %v513
        %547 = vmatprep.subr.mxu0 0.0
        %548 = vmatpush1.msra.mxu0 %v512
        %549 = vmatprep.subr.mxu0 0.0
        %550 = vmatpush1.msra.mxu0 %v511
        %551 = vmatprep.subr.mxu0 0.0
        %552 = vmatpush2.msra.mxu0 0.0
        %553 = vmatprep.subr.mxu0 0.0
        %554 = vmatpush2.msra.mxu0 0.0
        %555 = vmatprep.subr.mxu0 0.0
        %556 = vmatpush2.msra.mxu0 0.0
        %557 = vmatprep.subr.mxu0 0.0
        %558 = vmatpush2.msra.mxu0 0.0
        %559 = vmatprep.subr.mxu0 0.0
        %560 = vmatpush2.msra.mxu0 0.0
        %561 = vmatprep.subr.mxu0 0.0
        %562 = vmatpush2.msra.mxu0 0.0
        %563 = vmatprep.subr.mxu0 0.0
        %564 = vmatpush2.msra.mxu0 0.0
        %565 = vmatprep.subr.mxu0 0.0
        %566 = vmatpush2.msra.mxu0 0.0
        %567 = vmatprep.subr.mxu0 0.0
        %568 = vmatpush2.msra.mxu0 0.0
        %569 = vmatprep.subr.mxu0 0.0
        %570 = vmatpush2.msra.mxu0 0.0
        %571 = vmatprep.subr.mxu0 0.0
        %572 = vmatpush2.msra.mxu0 0.0
        %573 = vmatprep.subr.mxu0 0.0
        %574 = vmatpush2.msra.mxu0 0.0
        %575 = vmatprep.subr.mxu0 0.0
        %576 = vmatpush2.msra.mxu0 0.0
        %577 = vmatprep.subr.mxu0 0.0
        %578 = vmatpush2.msra.mxu0 0.0
        %579 = vmatprep.subr.mxu0 0.0
        %580 = vmatpush2.msra.mxu0 0.0
        %581 = vmatprep.subr.mxu0 0.0
        %582 = vmatpush2.msra.mxu0 0.0
        %583 = vmatprep.mubr.f32.mxu0 0.0
        %584 = vmatmul.mubr.f32.gmra.mxu0 %v517
        %v585 = vpop.f32.mrf.mxu0
        %v586 = vadd.f32 %v515, %v585
        %v587 = vpop.f32.mrf.mxu0
        %588 = vdwg.mxu0
        %vm589 = vcmask 8192
        %590 = vst.msk [vmem:[%s284] sm:$0x1] %vm589, %v586
        %s591 = sand.u32 %s183, 1
        %s592 = scalar_lea.sflag [#allocation5], %s591
        %s593 = sand.u32 %s183, 1
        %s594 = scalar_lea.vmem [#allocation6], %s593
        // Predicated region
        $region53: #{tpu_custom_call.1} parent=47 // pred_check
          %p595 = pneg %p193
        $region54: #{tpu_custom_call.1} parent=47 // pred_check_branch
          %597 = sbr.rel (%p595) target = $region56
        $region55: #{tpu_custom_call.1} parent=47 // pred_region
          %s599 = ssub.s32 16, 16
          %600 = vsyncadd %s592, %s599
          %s601 = smul.addr %s23, 16
          %s602 = scalar_lea.hbm %s7, %s601
          %s604 = sshll.u32 %s594, 4
          %s605 = int_to_ptr.vmem [resolvable:$true] %s604
          %607 = dma.vmem_to_hbm [thread:$0]  %s605, 16, %s602, %s592
        $region56: #{tpu_custom_call.1} parent=47 // pred_fallthru
          _
      $region48: #{tpu_custom_call.1} parent=5 // pred_fallthru
        _
      %p608 = scmp.le.s32.totalorder 2, %s18
      // Predicated region
      $region57: #{tpu_custom_call.1} parent=5 // pred_check
        %p609 = pneg %p608
      $region58: #{tpu_custom_call.1} parent=5 // pred_check_branch
        %611 = sbr.rel (%p609) target = $region60
      $region59: #{tpu_custom_call.1} parent=5 // pred_region
        %s612 = ssub.s32 %s18, 2
        // Predicated region
        $region61: #{tpu_custom_call.1} parent=59 // pred_check
          %p613 = pneg %p199
        $region62: #{tpu_custom_call.1} parent=59 // pred_check_branch
          %615 = sbr.rel (%p613) target = $region64
        $region63: #{tpu_custom_call.1} parent=59 // pred_region
          %s616 = sand.u32 %s184, 1
          %s617 = scalar_lea.sflag [#allocation5], %s616
          %s618 = sand.u32 %s184, 1
          %s619 = scalar_lea.vmem [#allocation6], %s618
          %620 = dma.done %s617, 16
        $region64: #{tpu_custom_call.1} parent=59 // pred_fallthru
          _
      $region60: #{tpu_custom_call.1} parent=5 // pred_fallthru
        _
    $region6: #{tpu_custom_call.1} parent=1 // loop_footer
      %s22 = sadd.s32 1, %s18
    $region7: #{tpu_custom_call.1} parent=1 // loop_footer_branch
      %17 = sbr.rel target = $region3
    $region8: #{tpu_custom_call.1} parent=1 // loop_exit
      _
    %621 = vsyncpa [#allocation4], 1
    %s622 = scalar_lea.sflag [#allocation4], 1
    %623 = vsyncpa %s622, 1
    %624 = vsyncpa [#allocation5], 1
    %s625 = scalar_lea.sflag [#allocation5], 1
    %626 = vsyncpa %s625, 1

</llo_original>
